<compile_context>
chip_gen: v6e
topology: v6e:2x2x1
jax: 0.10.0
libtpu: 0.0.40
codegen_flags: <defaults>
</compile_context>

<pallas_src>
import functools

import numpy as np
import jax
import jax.numpy as jnp
from jax import lax
from jax.experimental import pallas as pl
from jax.experimental.pallas import tpu as pltpu

KSIZE = 3
BN_EPS = 1e-5
LANE = 128            # fc2 output padded to one lane group -> dense (B,128) store
DEFAULT_BLOCK_B = 32  # images per grid step (per-image VMEM use is only ~KBs)


# ----------------------------------------------------------------------------
# Fused kernel: 3x [conv3x3 'same' + BN + ReLU + maxpool2x2] + fc1(+BN1d)+ReLU
#               + (dropout=id) + fc2, for a block of B images.
# ----------------------------------------------------------------------------
def _wide_cnn_kernel(x_ref, tw1_ref, tb1_ref, tw2_ref, tb2_ref, tw3_ref, tb3_ref,
                     fw1_ref, fb1_ref, fw2_ref, fb2_ref, o_ref,
                     pbuf2, pbuf3, *, B, H, W, C0, C1, C2, C3):
    f32, bf16 = jnp.float32, jnp.bfloat16
    H2, H3, H4 = H // 2, H // 4, H // 8
    W2, W3 = W // 2, W // 4

    def conv_bn_relu_pool(read_lhs, hi, k, tw_ref, tb_ref):
        """3x3 'same' conv (+folded BN) + ReLU + 2x2 max-pool.

        read_lhs(dy) -> (hi, B, k) slab of the zero-row-padded input.  The W
        taps (and the W zero padding) of the conv are folded into the banded
        width-Toeplitz weight tw_ref[dy]: (k, nc); its output columns are
        ordered even-output-pixels-first, so the W half of the pool is a single
        lane-slice max, and the H half is a free leading-dim split + max.
        """
        nc = tw_ref.shape[-1]
        acc = jnp.dot(read_lhs(0).reshape(hi * B, k).astype(bf16), tw_ref[0],
                      preferred_element_type=f32)
        for dy in (1, 2):
            acc = acc + jnp.dot(read_lhs(dy).reshape(hi * B, k).astype(bf16),
                                tw_ref[dy], preferred_element_type=f32)
        y = jnp.maximum(acc + tb_ref[...], 0.0)           # bias/BN shift + ReLU
        y = y.reshape(hi, B, nc)
        half = nc // 2
        y = jnp.maximum(y[:, :, :half], y[:, :, half:])   # W half of the pool
        y = y.reshape(hi // 2, 2, B, half)                 # leading-dim split
        return jnp.max(y, axis=1)                          # H half of the pool

    # ---- layer 1: input already zero-H-padded by the host -------------------
    a = conv_bn_relu_pool(lambda dy: x_ref[dy:dy + H, :, :], H, W * C0,
                          tw1_ref, tb1_ref)                # (H2, B, W2*C1)
    zrow = jnp.zeros((B, W2 * C1), f32)
    pbuf2[0] = zrow                                        # halo-only zeroing
    pbuf2[H2 + 1] = zrow
    pbuf2[1:H2 + 1] = a

    # ---- layer 2 -------------------------------------------------------------
    a = conv_bn_relu_pool(lambda dy: pbuf2[dy:dy + H2, :, :], H2, W2 * C1,
                          tw2_ref, tb2_ref)                # (H3, B, W3*C2)
    zrow = jnp.zeros((B, W3 * C2), f32)
    pbuf3[0] = zrow
    pbuf3[H3 + 1] = zrow
    pbuf3[1:H3 + 1] = a

    # ---- layer 3 -------------------------------------------------------------
    a = conv_bn_relu_pool(lambda dy: pbuf3[dy:dy + H3, :, :], H3, W3 * C2,
                          tw3_ref, tb3_ref)                # (H4, B, W4*C3)

    # ---- flatten (NHWC order; fc1 rows pre-permuted to match) ----------------
    xrow = jnp.concatenate([a[i] for i in range(H4)], axis=-1)   # (B, H4*W4*C3)

    # ---- fc1 (+ folded bn4) + ReLU + dropout(identity) + fc2 (f32) -----------
    h1 = jnp.dot(xrow.astype(bf16), fw1_ref[...], preferred_element_type=f32)
    h1 = jnp.maximum(h1 + fb1_ref[...], 0.0)
    # TODO(synk): Dropout(p=0.5) is the identity in eval mode; the training-mode
    # random mask is not implemented in-kernel.
    out = jnp.dot(h1, fw2_ref[...], preferred_element_type=f32) + fb2_ref[...]
    o_ref[...] = out                                       # (B, LANE) dense store


# ----------------------------------------------------------------------------
# pallas_call wrapper
# ----------------------------------------------------------------------------
def _const_spec(arr):
    nd = arr.ndim
    return pl.BlockSpec(arr.shape, lambda n: (0,) * nd)


def fused_forward(x_grp, kp, *, H, W, C0, C1, C2, C3, block_b):
    ngrid = x_grp.shape[0]
    kernel = functools.partial(_wide_cnn_kernel, B=block_b, H=H, W=W,
                               C0=C0, C1=C1, C2=C2, C3=C3)
    grid_spec = pltpu.PrefetchScalarGridSpec(
        num_scalar_prefetch=0,
        grid=(ngrid,),                             # one block of B images / step
        in_specs=[
            pl.BlockSpec((None, H + 2, block_b, W * C0),
                         lambda n: (n, 0, 0, 0)),
            _const_spec(kp['tw1']), _const_spec(kp['tb1']),
            _const_spec(kp['tw2']), _const_spec(kp['tb2']),
            _const_spec(kp['tw3']), _const_spec(kp['tb3']),
            _const_spec(kp['fw1']), _const_spec(kp['fb1']),
            _const_spec(kp['fw2']), _const_spec(kp['fb2']),
        ],
        out_specs=pl.BlockSpec((None, block_b, LANE), lambda n: (n, 0, 0)),
        scratch_shapes=[
            # zero-H-padded, pooled activations of layers 1 and 2 (lane-dense)
            pltpu.VMEM((H // 2 + 2, block_b, (W // 2) * C1), jnp.float32),
            pltpu.VMEM((H // 4 + 2, block_b, (W // 4) * C2), jnp.float32),
        ],
    )
    return pl.pallas_call(
        kernel,
        out_shape=jax.ShapeDtypeStruct((ngrid, block_b, LANE), jnp.float32),
        grid_spec=grid_spec,
        compiler_params=pltpu.CompilerParams(
            dimension_semantics=("parallel",),      # shard grid over v7x TCs
            vmem_limit_bytes=48 * 1024 * 1024,      # explicit; fits v5e/v6e/v7x
        ),
    )(x_grp, kp['tw1'], kp['tb1'], kp['tw2'], kp['tb2'], kp['tw3'], kp['tb3'],
      kp['fw1'], kp['fb1'], kp['fw2'], kp['fb2'])


@functools.partial(jax.jit, static_argnames=("num_classes", "block_b"))
def wide_cnn_forward(x_nchw, kp, *, num_classes, block_b=DEFAULT_BLOCK_B):
    N, C0, H, W = x_nchw.shape
    assert H % 8 == 0 and W % 8 == 0, "needs three even 2x2 pools"
    C1 = kp['tb1'].shape[1] // W
    C2 = kp['tb2'].shape[1] // (W // 2)
    C3 = kp['tb3'].shape[1] // (W // 4)

    # Images per grid step: always >=2 grid steps when N >= 2 (feeds both v7x
    # TensorCores), sublane-tile aligned when possible.
    bb = min(block_b, max(1, -(-N // 2)))
    if bb >= 8:
        bb -= bb % 8
    n_pad = -N % bb
    ngrid = (N + n_pad) // bb

    # Host-side layout prep (tiny, XLA-fused): NCHW -> lane-dense NHWC rows of
    # W*C0 lanes, grouped to (ngrid, H+2, bb, W*C0) with the batch block on the
    # sublane axis and one zero halo row above/below for the 3x3 conv.
    x = jnp.transpose(x_nchw, (0, 2, 3, 1)).reshape(N, H, W * C0)
    if n_pad:
        x = jnp.pad(x, ((0, n_pad), (0, 0), (0, 0)))
    x = x.reshape(ngrid, bb, H, W * C0).transpose(0, 2, 1, 3)
    x = jnp.pad(x, ((0, 0), (1, 1), (0, 0), (0, 0)))

    out = fused_forward(x, kp, H=H, W=W, C0=C0, C1=C1, C2=C2, C3=C3,
                        block_b=bb)
    return out.reshape(ngrid * bb, LANE)[:N, :num_classes]


# ----------------------------------------------------------------------------
# Offline parameter preparation (constant-folded in deployment)
# ----------------------------------------------------------------------------
def _fold_bn(g, be, m, v):
    s = g / np.sqrt(v + BN_EPS)
    return s, be - m * s


def _width_toeplitz(w9, wi):
    """(9, Cin, Cout) 3x3 taps -> (3, wi*Cin, wi*Cout) banded matrices (one per
    row tap dy) implementing the 'same' conv along W (zero padding included by
    omitting out-of-range taps).  Output columns are ordered
    even-output-pixels-first so the W half of the 2x2 pool is one lane-slice
    max in the kernel."""
    cin, cout = w9.shape[1], w9.shape[2]
    w33 = w9.reshape(KSIZE, KSIZE, cin, cout)
    half = wi // 2
    tw = np.zeros((KSIZE, wi * cin, wi * cout), np.float32)
    for dy in range(KSIZE):
        for wo in range(wi):
            col = wo // 2 if wo % 2 == 0 else half + wo // 2
            for dx in range(KSIZE):
                win = wo + dx - 1
                if 0 <= win < wi:
                    tw[dy, win * cin:(win + 1) * cin,
                       col * cout:(col + 1) * cout] = w33[dy, dx]
    return tw


def prepare_params(p, *, height, width):
    """Folds BN into the conv / fc1 weights, builds the width-Toeplitz conv
    weights, folds the torch NCHW-flatten permutation into fc1's rows, and pads
    fc2 to 128 output lanes (kept in f32)."""
    kp = {}
    widths = (width, width // 2, width // 4)
    for i in (1, 2, 3):
        taps = np.asarray(p[f'cw{i}'], np.float32)          # (9, Cin, Cout)
        s, t = _fold_bn(np.asarray(p[f'g{i}']), np.asarray(p[f'be{i}']),
                        np.asarray(p[f'm{i}']), np.asarray(p[f'v{i}']))
        tw = _width_toeplitz(taps * s[None, None, :], widths[i - 1])
        kp[f'tw{i}'] = jnp.asarray(tw, jnp.bfloat16)
        kp[f'tb{i}'] = jnp.asarray(np.tile(t, widths[i - 1])[None, :],
                                   jnp.float32)

    # fc1: reorder rows from torch's NCHW flatten (c, h, w) to the kernel's
    # NHWC flatten (h, w, c), then fold the BN1d affine in.
    h4, w4 = height // 8, width // 8
    c3 = p['cw3'].shape[2]
    s4, t4 = _fold_bn(np.asarray(p['g4']), np.asarray(p['be4']),
                      np.asarray(p['m4']), np.asarray(p['v4']))
    w1 = np.asarray(p['fc1_w'], np.float32)
    w1 = w1.reshape(c3, h4, w4, -1).transpose(1, 2, 0, 3).reshape(c3 * h4 * w4, -1)
    kp['fw1'] = jnp.asarray(w1 * s4[None, :], jnp.bfloat16)
    kp['fb1'] = jnp.asarray((np.asarray(p['fc1_b']) * s4 + t4)[None, :],
                            jnp.float32)

    # fc2: pad output dim to a full 128-lane group for a dense store; keep f32.
    n_hidden, ncls = p['fc2_w'].shape
    w2 = np.zeros((n_hidden, LANE), np.float32)
    w2[:, :ncls] = np.asarray(p['fc2_w'])
    b2 = np.zeros((1, LANE), np.float32)
    b2[0, :ncls] = np.asarray(p['fc2_b'])
    kp['fw2'] = jnp.asarray(w2)
    kp['fb2'] = jnp.asarray(b2)
    return kp


# ----------------------------------------------------------------------------
# Pure-JAX f32 reference (mirrors the PyTorch forward in NCHW)
# ----------------------------------------------------------------------------
def reference_forward(x, p):
    def conv(x, taps):
        cin, cout = taps.shape[1], taps.shape[2]
        w = jnp.transpose(taps.reshape(KSIZE, KSIZE, cin, cout), (3, 2, 0, 1))
        return lax.conv_general_dilated(
            x, w, (1, 1), 'SAME',
            dimension_numbers=('NCHW', 'OIHW', 'NCHW'))

    def bn(x, g, b, m, v):
        s = g / jnp.sqrt(v + BN_EPS)
        return x * s[None, :, None, None] + (b - m * s)[None, :, None, None]

    def pool(x):
        return lax.reduce_window(x, -jnp.inf, lax.max,
                                 (1, 1, 2, 2), (1, 1, 2, 2), 'VALID')

    x = pool(jax.nn.relu(bn(conv(x, p['cw1']),
                            p['g1'], p['be1'], p['m1'], p['v1'])))
    x = pool(jax.nn.relu(bn(conv(x, p['cw2']),
                            p['g2'], p['be2'], p['m2'], p['v2'])))
    x = pool(jax.nn.relu(bn(conv(x, p['cw3']),
                            p['g3'], p['be3'], p['m3'], p['v3'])))
    x = x.reshape(x.shape[0], -1)
    h = x @ p['fc1_w'] + p['fc1_b']
    s4 = p['g4'] / jnp.sqrt(p['v4'] + BN_EPS)
    h = jax.nn.relu(h * s4 + (p['be4'] - p['m4'] * s4))
    return h @ p['fc2_w'] + p['fc2_b']


# ----------------------------------------------------------------------------
if __name__ == "__main__":
    in_ch, hid1, hid2, out_ch = 4, 8, 8, 16
    H = W = 16
    num_classes = 10
    N = 16                                   # exercises the batched path: bb=8, grid=(2,)
    F = out_ch * (W // 8) * (H // 8)         # 16 * 2 * 2 = 64 (torch expression)

    key = jax.random.PRNGKey(0)
    ks = jax.random.split(key, 12)

    def taps(k, cin, cout):
        return jax.random.normal(k, (KSIZE * KSIZE, cin, cout),
                                 jnp.float32) * 0.1

    def bn_params(k, c):
        k1, k2, k3, k4 = jax.random.split(k, 4)
        g = 1.0 + 0.1 * jax.random.normal(k1, (c,), jnp.float32)
        b = 0.1 * jax.random.normal(k2, (c,), jnp.float32)
        m = 0.1 * jax.random.normal(k3, (c,), jnp.float32)
        v = jax.random.uniform(k4, (c,), jnp.float32, 0.5, 1.5)
        return g, b, m, v

    p = {}
    p['cw1'] = taps(ks[0], in_ch, hid1)
    p['g1'], p['be1'], p['m1'], p['v1'] = bn_params(ks[1], hid1)
    p['cw2'] = taps(ks[2], hid1, hid2)
    p['g2'], p['be2'], p['m2'], p['v2'] = bn_params(ks[3], hid2)
    p['cw3'] = taps(ks[4], hid2, out_ch)
    p['g3'], p['be3'], p['m3'], p['v3'] = bn_params(ks[5], out_ch)
    p['fc1_w'] = jax.random.normal(ks[6], (F, 1024), jnp.float32) * 0.05
    p['fc1_b'] = 0.05 * jax.random.normal(ks[7], (1024,), jnp.float32)
    p['g4'], p['be4'], p['m4'], p['v4'] = bn_params(ks[8], 1024)
    p['fc2_w'] = jax.random.normal(ks[9], (1024, num_classes),
                                   jnp.float32) * 0.03
    p['fc2_b'] = 0.03 * jax.random.normal(ks[10], (num_classes,), jnp.float32)

    x = jax.random.normal(ks[11], (N, in_ch, H, W), jnp.float32)

    kp = prepare_params(p, height=H, width=W)
    out = jax.block_until_ready(
        wide_cnn_forward(x, kp, num_classes=num_classes))
    ref = jax.block_until_ready(reference_forward(x, p))

    assert out.shape == (N, num_classes), out.shape
    err = float(jnp.max(jnp.abs(out - ref)))
    # Tolerance reflects bf16 MXU inputs (f32 accumulation) vs an f32 reference.
    assert err < 2e-2, f"mismatch vs reference, max abs err = {err}"
    print("KERNEL_OK")
</pallas_src>

<mosaic_0001>
module attributes {stable_mosaic.version = 11 : i64} {
  func.func @_wide_cnn_kernel(%arg0: i32, %arg1: memref<1x18x8x64xf32, #tpu.memory_space<vmem>>, %arg2: memref<3x64x128xbf16, #tpu.memory_space<vmem>>, %arg3: memref<1x128xf32, #tpu.memory_space<vmem>>, %arg4: memref<3x64x64xbf16, #tpu.memory_space<vmem>>, %arg5: memref<1x64xf32, #tpu.memory_space<vmem>>, %arg6: memref<3x32x64xbf16, #tpu.memory_space<vmem>>, %arg7: memref<1x64xf32, #tpu.memory_space<vmem>>, %arg8: memref<64x1024xbf16, #tpu.memory_space<vmem>>, %arg9: memref<1x1024xf32, #tpu.memory_space<vmem>>, %arg10: memref<1024x128xf32, #tpu.memory_space<vmem>>, %arg11: memref<1x128xf32, #tpu.memory_space<vmem>>, %arg12: memref<1x8x128xf32, #tpu.memory_space<vmem>>, %arg13: memref<10x8x64xf32, #tpu.memory_space<vmem>>, %arg14: memref<6x8x32xf32, #tpu.memory_space<vmem>>) attributes {dimension_semantics = [#tpu.dimension_semantics<parallel>], iteration_bounds = array<i64: 2>, scalar_prefetch = 0 : i64, scratch_operands = 2 : i64, tpu.core_type = #tpu.core_type<tc>, window_params = [{transform_indices = @transform_0, window_bounds = array<i64: 1, 18, 8, 64>}, {pipeline_mode = #tpu.pipeline_mode<synchronous>, transform_indices = @transform_1, window_bounds = array<i64: 3, 64, 128>}, {pipeline_mode = #tpu.pipeline_mode<synchronous>, transform_indices = @transform_2, window_bounds = array<i64: 1, 128>}, {pipeline_mode = #tpu.pipeline_mode<synchronous>, transform_indices = @transform_3, window_bounds = array<i64: 3, 64, 64>}, {pipeline_mode = #tpu.pipeline_mode<synchronous>, transform_indices = @transform_4, window_bounds = array<i64: 1, 64>}, {pipeline_mode = #tpu.pipeline_mode<synchronous>, transform_indices = @transform_5, window_bounds = array<i64: 3, 32, 64>}, {pipeline_mode = #tpu.pipeline_mode<synchronous>, transform_indices = @transform_6, window_bounds = array<i64: 1, 64>}, {pipeline_mode = #tpu.pipeline_mode<synchronous>, transform_indices = @transform_7, window_bounds = array<i64: 64, 1024>}, {pipeline_mode = #tpu.pipeline_mode<synchronous>, transform_indices = @transform_8, window_bounds = array<i64: 1, 1024>}, {pipeline_mode = #tpu.pipeline_mode<synchronous>, transform_indices = @transform_9, window_bounds = array<i64: 1024, 128>}, {pipeline_mode = #tpu.pipeline_mode<synchronous>, transform_indices = @transform_10, window_bounds = array<i64: 1, 128>}, {transform_indices = @transform_11, window_bounds = array<i64: 1, 8, 128>}]} {
    %c0 = arith.constant 0 : index
    %c0_0 = arith.constant 0 : index
    %c0_1 = arith.constant 0 : index
    %c0_2 = arith.constant 0 : index
    %0 = vector.load %arg1[%c0, %c0_0, %c0_1, %c0_2] : memref<1x18x8x64xf32, #tpu.memory_space<vmem>>, vector<1x16x8x64xf32>
    %1 = vector.shape_cast %0 : vector<1x16x8x64xf32> to vector<16x8x64xf32>
    %2 = vector.shape_cast %1 : vector<16x8x64xf32> to vector<128x64xf32>
    %3 = arith.truncf %2 : vector<128x64xf32> to vector<128x64xbf16>
    %c0_3 = arith.constant 0 : index
    %c0_4 = arith.constant 0 : index
    %c0_5 = arith.constant 0 : index
    %4 = vector.load %arg2[%c0_3, %c0_4, %c0_5] : memref<3x64x128xbf16, #tpu.memory_space<vmem>>, vector<1x64x128xbf16>
    %5 = vector.shape_cast %4 : vector<1x64x128xbf16> to vector<64x128xbf16>
    %cst = arith.constant dense<0.000000e+00> : vector<128x128xf32>
    %6 = tpu.matmul %3, %5, %cst {dimension_numbers = #tpu.dot_dimension_numbers<[1], [0], [0], [1], [0, 0, 1, 1], [], []>} : vector<128x64xbf16>, vector<64x128xbf16>, vector<128x128xf32> -> vector<128x128xf32>
    %c0_6 = arith.constant 0 : index
    %c1 = arith.constant 1 : index
    %c0_7 = arith.constant 0 : index
    %c0_8 = arith.constant 0 : index
    %7 = vector.load %arg1[%c0_6, %c1, %c0_7, %c0_8] : memref<1x18x8x64xf32, #tpu.memory_space<vmem>>, vector<1x16x8x64xf32>
    %8 = vector.shape_cast %7 : vector<1x16x8x64xf32> to vector<16x8x64xf32>
    %9 = vector.shape_cast %8 : vector<16x8x64xf32> to vector<128x64xf32>
    %10 = arith.truncf %9 : vector<128x64xf32> to vector<128x64xbf16>
    %c1_9 = arith.constant 1 : index
    %c0_10 = arith.constant 0 : index
    %c0_11 = arith.constant 0 : index
    %11 = vector.load %arg2[%c1_9, %c0_10, %c0_11] : memref<3x64x128xbf16, #tpu.memory_space<vmem>>, vector<1x64x128xbf16>
    %12 = vector.shape_cast %11 : vector<1x64x128xbf16> to vector<64x128xbf16>
    %cst_12 = arith.constant dense<0.000000e+00> : vector<128x128xf32>
    %13 = tpu.matmul %10, %12, %cst_12 {dimension_numbers = #tpu.dot_dimension_numbers<[1], [0], [0], [1], [0, 0, 1, 1], [], []>} : vector<128x64xbf16>, vector<64x128xbf16>, vector<128x128xf32> -> vector<128x128xf32>
    %14 = arith.addf %6, %13 : vector<128x128xf32>
    %c0_13 = arith.constant 0 : index
    %c2 = arith.constant 2 : index
    %c0_14 = arith.constant 0 : index
    %c0_15 = arith.constant 0 : index
    %15 = vector.load %arg1[%c0_13, %c2, %c0_14, %c0_15] : memref<1x18x8x64xf32, #tpu.memory_space<vmem>>, vector<1x16x8x64xf32>
    %16 = vector.shape_cast %15 : vector<1x16x8x64xf32> to vector<16x8x64xf32>
    %17 = vector.shape_cast %16 : vector<16x8x64xf32> to vector<128x64xf32>
    %18 = arith.truncf %17 : vector<128x64xf32> to vector<128x64xbf16>
    %c2_16 = arith.constant 2 : index
    %c0_17 = arith.constant 0 : index
    %c0_18 = arith.constant 0 : index
    %19 = vector.load %arg2[%c2_16, %c0_17, %c0_18] : memref<3x64x128xbf16, #tpu.memory_space<vmem>>, vector<1x64x128xbf16>
    %20 = vector.shape_cast %19 : vector<1x64x128xbf16> to vector<64x128xbf16>
    %cst_19 = arith.constant dense<0.000000e+00> : vector<128x128xf32>
    %21 = tpu.matmul %18, %20, %cst_19 {dimension_numbers = #tpu.dot_dimension_numbers<[1], [0], [0], [1], [0, 0, 1, 1], [], []>} : vector<128x64xbf16>, vector<64x128xbf16>, vector<128x128xf32> -> vector<128x128xf32>
    %22 = arith.addf %14, %21 : vector<128x128xf32>
    %c0_20 = arith.constant 0 : index
    %c0_21 = arith.constant 0 : index
    %23 = vector.load %arg3[%c0_20, %c0_21] : memref<1x128xf32, #tpu.memory_space<vmem>>, vector<1x128xf32>
    %24 = vector.broadcast %23 : vector<1x128xf32> to vector<128x128xf32>
    %25 = arith.addf %22, %24 : vector<128x128xf32>
    %cst_22 = arith.constant 0.000000e+00 : f32
    %26 = vector.broadcast %cst_22 : f32 to vector<128x128xf32>
    %27 = arith.maximumf %25, %26 : vector<128x128xf32>
    %28 = vector.shape_cast %27 : vector<128x128xf32> to vector<16x8x128xf32>
    %29 = vector.extract_strided_slice %28 {offsets = [0, 0, 0], sizes = [16, 8, 64], strides = [1, 1, 1]} : vector<16x8x128xf32> to vector<16x8x64xf32>
    %30 = vector.extract_strided_slice %28 {offsets = [0, 0, 64], sizes = [16, 8, 64], strides = [1, 1, 1]} : vector<16x8x128xf32> to vector<16x8x64xf32>
    %31 = arith.maximumf %29, %30 : vector<16x8x64xf32>
    %32 = vector.shape_cast %31 : vector<16x8x64xf32> to vector<8x2x8x64xf32>
    %cst_23 = arith.constant dense<0xFF800000> : vector<8x8x64xf32>
    %33 = vector.multi_reduction <maximumf>, %32, %cst_23 [1] : vector<8x2x8x64xf32> to vector<8x8x64xf32>
    %cst_24 = arith.constant 0.000000e+00 : f32
    %34 = vector.broadcast %cst_24 : f32 to vector<8x64xf32>
    %c0_25 = arith.constant 0 : index
    %c0_26 = arith.constant 0 : index
    %c0_27 = arith.constant 0 : index
    %35 = vector.load %arg13[%c0_25, %c0_26, %c0_27] : memref<10x8x64xf32, #tpu.memory_space<vmem>>, vector<1x8x64xf32>
    %36 = vector.shape_cast %35 : vector<1x8x64xf32> to vector<8x64xf32>
    %37 = vector.shape_cast %34 : vector<8x64xf32> to vector<1x8x64xf32>
    tpu.vector_store %arg13[%c0_25, %c0_26, %c0_27], %37 {strides = array<i32>} : memref<10x8x64xf32, #tpu.memory_space<vmem>>, vector<1x8x64xf32>,
    %c9 = arith.constant 9 : index
    %c0_28 = arith.constant 0 : index
    %c0_29 = arith.constant 0 : index
    %38 = vector.load %arg13[%c9, %c0_28, %c0_29] : memref<10x8x64xf32, #tpu.memory_space<vmem>>, vector<1x8x64xf32>
    %39 = vector.shape_cast %38 : vector<1x8x64xf32> to vector<8x64xf32>
    %40 = vector.shape_cast %34 : vector<8x64xf32> to vector<1x8x64xf32>
    tpu.vector_store %arg13[%c9, %c0_28, %c0_29], %40 {strides = array<i32>} : memref<10x8x64xf32, #tpu.memory_space<vmem>>, vector<1x8x64xf32>,
    %c1_30 = arith.constant 1 : index
    %c0_31 = arith.constant 0 : index
    %c0_32 = arith.constant 0 : index
    %41 = vector.load %arg13[%c1_30, %c0_31, %c0_32] : memref<10x8x64xf32, #tpu.memory_space<vmem>>, vector<8x8x64xf32>
    tpu.vector_store %arg13[%c1_30, %c0_31, %c0_32], %33 {strides = array<i32>} : memref<10x8x64xf32, #tpu.memory_space<vmem>>, vector<8x8x64xf32>,
    %c0_33 = arith.constant 0 : index
    %c0_34 = arith.constant 0 : index
    %c0_35 = arith.constant 0 : index
    %42 = vector.load %arg13[%c0_33, %c0_34, %c0_35] : memref<10x8x64xf32, #tpu.memory_space<vmem>>, vector<8x8x64xf32>
    %43 = vector.shape_cast %42 : vector<8x8x64xf32> to vector<64x64xf32>
    %44 = arith.truncf %43 : vector<64x64xf32> to vector<64x64xbf16>
    %c0_36 = arith.constant 0 : index
    %c0_37 = arith.constant 0 : index
    %c0_38 = arith.constant 0 : index
    %45 = vector.load %arg4[%c0_36, %c0_37, %c0_38] : memref<3x64x64xbf16, #tpu.memory_space<vmem>>, vector<1x64x64xbf16>
    %46 = vector.shape_cast %45 : vector<1x64x64xbf16> to vector<64x64xbf16>
    %cst_39 = arith.constant dense<0.000000e+00> : vector<64x64xf32>
    %47 = tpu.matmul %44, %46, %cst_39 {dimension_numbers = #tpu.dot_dimension_numbers<[1], [0], [0], [1], [0, 0, 1, 1], [], []>} : vector<64x64xbf16>, vector<64x64xbf16>, vector<64x64xf32> -> vector<64x64xf32>
    %c1_40 = arith.constant 1 : index
    %c0_41 = arith.constant 0 : index
    %c0_42 = arith.constant 0 : index
    %48 = vector.load %arg13[%c1_40, %c0_41, %c0_42] : memref<10x8x64xf32, #tpu.memory_space<vmem>>, vector<8x8x64xf32>
    %49 = vector.shape_cast %48 : vector<8x8x64xf32> to vector<64x64xf32>
    %50 = arith.truncf %49 : vector<64x64xf32> to vector<64x64xbf16>
    %c1_43 = arith.constant 1 : index
    %c0_44 = arith.constant 0 : index
    %c0_45 = arith.constant 0 : index
    %51 = vector.load %arg4[%c1_43, %c0_44, %c0_45] : memref<3x64x64xbf16, #tpu.memory_space<vmem>>, vector<1x64x64xbf16>
    %52 = vector.shape_cast %51 : vector<1x64x64xbf16> to vector<64x64xbf16>
    %cst_46 = arith.constant dense<0.000000e+00> : vector<64x64xf32>
    %53 = tpu.matmul %50, %52, %cst_46 {dimension_numbers = #tpu.dot_dimension_numbers<[1], [0], [0], [1], [0, 0, 1, 1], [], []>} : vector<64x64xbf16>, vector<64x64xbf16>, vector<64x64xf32> -> vector<64x64xf32>
    %54 = arith.addf %47, %53 : vector<64x64xf32>
    %c2_47 = arith.constant 2 : index
    %c0_48 = arith.constant 0 : index
    %c0_49 = arith.constant 0 : index
    %55 = vector.load %arg13[%c2_47, %c0_48, %c0_49] : memref<10x8x64xf32, #tpu.memory_space<vmem>>, vector<8x8x64xf32>
    %56 = vector.shape_cast %55 : vector<8x8x64xf32> to vector<64x64xf32>
    %57 = arith.truncf %56 : vector<64x64xf32> to vector<64x64xbf16>
    %c2_50 = arith.constant 2 : index
    %c0_51 = arith.constant 0 : index
    %c0_52 = arith.constant 0 : index
    %58 = vector.load %arg4[%c2_50, %c0_51, %c0_52] : memref<3x64x64xbf16, #tpu.memory_space<vmem>>, vector<1x64x64xbf16>
    %59 = vector.shape_cast %58 : vector<1x64x64xbf16> to vector<64x64xbf16>
    %cst_53 = arith.constant dense<0.000000e+00> : vector<64x64xf32>
    %60 = tpu.matmul %57, %59, %cst_53 {dimension_numbers = #tpu.dot_dimension_numbers<[1], [0], [0], [1], [0, 0, 1, 1], [], []>} : vector<64x64xbf16>, vector<64x64xbf16>, vector<64x64xf32> -> vector<64x64xf32>
    %61 = arith.addf %54, %60 : vector<64x64xf32>
    %c0_54 = arith.constant 0 : index
    %c0_55 = arith.constant 0 : index
    %62 = vector.load %arg5[%c0_54, %c0_55] : memref<1x64xf32, #tpu.memory_space<vmem>>, vector<1x64xf32>
    %63 = vector.broadcast %62 : vector<1x64xf32> to vector<64x64xf32>
    %64 = arith.addf %61, %63 : vector<64x64xf32>
    %cst_56 = arith.constant 0.000000e+00 : f32
    %65 = vector.broadcast %cst_56 : f32 to vector<64x64xf32>
    %66 = arith.maximumf %64, %65 : vector<64x64xf32>
    %67 = vector.shape_cast %66 : vector<64x64xf32> to vector<8x8x64xf32>
    %68 = vector.extract_strided_slice %67 {offsets = [0, 0, 0], sizes = [8, 8, 32], strides = [1, 1, 1]} : vector<8x8x64xf32> to vector<8x8x32xf32>
    %69 = vector.extract_strided_slice %67 {offsets = [0, 0, 32], sizes = [8, 8, 32], strides = [1, 1, 1]} : vector<8x8x64xf32> to vector<8x8x32xf32>
    %70 = arith.maximumf %68, %69 : vector<8x8x32xf32>
    %71 = vector.shape_cast %70 : vector<8x8x32xf32> to vector<4x2x8x32xf32>
    %cst_57 = arith.constant dense<0xFF800000> : vector<4x8x32xf32>
    %72 = vector.multi_reduction <maximumf>, %71, %cst_57 [1] : vector<4x2x8x32xf32> to vector<4x8x32xf32>
    %cst_58 = arith.constant 0.000000e+00 : f32
    %73 = vector.broadcast %cst_58 : f32 to vector<8x32xf32>
    %c0_59 = arith.constant 0 : index
    %c0_60 = arith.constant 0 : index
    %c0_61 = arith.constant 0 : index
    %74 = vector.load %arg14[%c0_59, %c0_60, %c0_61] : memref<6x8x32xf32, #tpu.memory_space<vmem>>, vector<1x8x32xf32>
    %75 = vector.shape_cast %74 : vector<1x8x32xf32> to vector<8x32xf32>
    %76 = vector.shape_cast %73 : vector<8x32xf32> to vector<1x8x32xf32>
    tpu.vector_store %arg14[%c0_59, %c0_60, %c0_61], %76 {strides = array<i32>} : memref<6x8x32xf32, #tpu.memory_space<vmem>>, vector<1x8x32xf32>,
    %c5 = arith.constant 5 : index
    %c0_62 = arith.constant 0 : index
    %c0_63 = arith.constant 0 : index
    %77 = vector.load %arg14[%c5, %c0_62, %c0_63] : memref<6x8x32xf32, #tpu.memory_space<vmem>>, vector<1x8x32xf32>
    %78 = vector.shape_cast %77 : vector<1x8x32xf32> to vector<8x32xf32>
    %79 = vector.shape_cast %73 : vector<8x32xf32> to vector<1x8x32xf32>
    tpu.vector_store %arg14[%c5, %c0_62, %c0_63], %79 {strides = array<i32>} : memref<6x8x32xf32, #tpu.memory_space<vmem>>, vector<1x8x32xf32>,
    %c1_64 = arith.constant 1 : index
    %c0_65 = arith.constant 0 : index
    %c0_66 = arith.constant 0 : index
    %80 = vector.load %arg14[%c1_64, %c0_65, %c0_66] : memref<6x8x32xf32, #tpu.memory_space<vmem>>, vector<4x8x32xf32>
    tpu.vector_store %arg14[%c1_64, %c0_65, %c0_66], %72 {strides = array<i32>} : memref<6x8x32xf32, #tpu.memory_space<vmem>>, vector<4x8x32xf32>,
    %c0_67 = arith.constant 0 : index
    %c0_68 = arith.constant 0 : index
    %c0_69 = arith.constant 0 : index
    %81 = vector.load %arg14[%c0_67, %c0_68, %c0_69] : memref<6x8x32xf32, #tpu.memory_space<vmem>>, vector<4x8x32xf32>
    %82 = vector.shape_cast %81 : vector<4x8x32xf32> to vector<32x32xf32>
    %83 = arith.truncf %82 : vector<32x32xf32> to vector<32x32xbf16>
    %c0_70 = arith.constant 0 : index
    %c0_71 = arith.constant 0 : index
    %c0_72 = arith.constant 0 : index
    %84 = vector.load %arg6[%c0_70, %c0_71, %c0_72] : memref<3x32x64xbf16, #tpu.memory_space<vmem>>, vector<1x32x64xbf16>
    %85 = vector.shape_cast %84 : vector<1x32x64xbf16> to vector<32x64xbf16>
    %cst_73 = arith.constant dense<0.000000e+00> : vector<32x64xf32>
    %86 = tpu.matmul %83, %85, %cst_73 {dimension_numbers = #tpu.dot_dimension_numbers<[1], [0], [0], [1], [0, 0, 1, 1], [], []>} : vector<32x32xbf16>, vector<32x64xbf16>, vector<32x64xf32> -> vector<32x64xf32>
    %c1_74 = arith.constant 1 : index
    %c0_75 = arith.constant 0 : index
    %c0_76 = arith.constant 0 : index
    %87 = vector.load %arg14[%c1_74, %c0_75, %c0_76] : memref<6x8x32xf32, #tpu.memory_space<vmem>>, vector<4x8x32xf32>
    %88 = vector.shape_cast %87 : vector<4x8x32xf32> to vector<32x32xf32>
    %89 = arith.truncf %88 : vector<32x32xf32> to vector<32x32xbf16>
    %c1_77 = arith.constant 1 : index
    %c0_78 = arith.constant 0 : index
    %c0_79 = arith.constant 0 : index
    %90 = vector.load %arg6[%c1_77, %c0_78, %c0_79] : memref<3x32x64xbf16, #tpu.memory_space<vmem>>, vector<1x32x64xbf16>
    %91 = vector.shape_cast %90 : vector<1x32x64xbf16> to vector<32x64xbf16>
    %cst_80 = arith.constant dense<0.000000e+00> : vector<32x64xf32>
    %92 = tpu.matmul %89, %91, %cst_80 {dimension_numbers = #tpu.dot_dimension_numbers<[1], [0], [0], [1], [0, 0, 1, 1], [], []>} : vector<32x32xbf16>, vector<32x64xbf16>, vector<32x64xf32> -> vector<32x64xf32>
    %93 = arith.addf %86, %92 : vector<32x64xf32>
    %c2_81 = arith.constant 2 : index
    %c0_82 = arith.constant 0 : index
    %c0_83 = arith.constant 0 : index
    %94 = vector.load %arg14[%c2_81, %c0_82, %c0_83] : memref<6x8x32xf32, #tpu.memory_space<vmem>>, vector<4x8x32xf32>
    %95 = vector.shape_cast %94 : vector<4x8x32xf32> to vector<32x32xf32>
    %96 = arith.truncf %95 : vector<32x32xf32> to vector<32x32xbf16>
    %c2_84 = arith.constant 2 : index
    %c0_85 = arith.constant 0 : index
    %c0_86 = arith.constant 0 : index
    %97 = vector.load %arg6[%c2_84, %c0_85, %c0_86] : memref<3x32x64xbf16, #tpu.memory_space<vmem>>, vector<1x32x64xbf16>
    %98 = vector.shape_cast %97 : vector<1x32x64xbf16> to vector<32x64xbf16>
    %cst_87 = arith.constant dense<0.000000e+00> : vector<32x64xf32>
    %99 = tpu.matmul %96, %98, %cst_87 {dimension_numbers = #tpu.dot_dimension_numbers<[1], [0], [0], [1], [0, 0, 1, 1], [], []>} : vector<32x32xbf16>, vector<32x64xbf16>, vector<32x64xf32> -> vector<32x64xf32>
    %100 = arith.addf %93, %99 : vector<32x64xf32>
    %c0_88 = arith.constant 0 : index
    %c0_89 = arith.constant 0 : index
    %101 = vector.load %arg7[%c0_88, %c0_89] : memref<1x64xf32, #tpu.memory_space<vmem>>, vector<1x64xf32>
    %102 = vector.broadcast %101 : vector<1x64xf32> to vector<32x64xf32>
    %103 = arith.addf %100, %102 : vector<32x64xf32>
    %cst_90 = arith.constant 0.000000e+00 : f32
    %104 = vector.broadcast %cst_90 : f32 to vector<32x64xf32>
    %105 = arith.maximumf %103, %104 : vector<32x64xf32>
    %106 = vector.shape_cast %105 : vector<32x64xf32> to vector<4x8x64xf32>
    %107 = vector.extract_strided_slice %106 {offsets = [0, 0, 0], sizes = [4, 8, 32], strides = [1, 1, 1]} : vector<4x8x64xf32> to vector<4x8x32xf32>
    %108 = vector.extract_strided_slice %106 {offsets = [0, 0, 32], sizes = [4, 8, 32], strides = [1, 1, 1]} : vector<4x8x64xf32> to vector<4x8x32xf32>
    %109 = arith.maximumf %107, %108 : vector<4x8x32xf32>
    %110 = vector.shape_cast %109 : vector<4x8x32xf32> to vector<2x2x8x32xf32>
    %cst_91 = arith.constant dense<0xFF800000> : vector<2x8x32xf32>
    %111 = vector.multi_reduction <maximumf>, %110, %cst_91 [1] : vector<2x2x8x32xf32> to vector<2x8x32xf32>
    %112 = vector.extract_strided_slice %111 {offsets = [0, 0, 0], sizes = [1, 8, 32], strides = [1, 1, 1]} : vector<2x8x32xf32> to vector<1x8x32xf32>
    %113 = vector.shape_cast %112 : vector<1x8x32xf32> to vector<8x32xf32>
    %114 = vector.extract_strided_slice %111 {offsets = [1, 0, 0], sizes = [1, 8, 32], strides = [1, 1, 1]} : vector<2x8x32xf32> to vector<1x8x32xf32>
    %115 = vector.shape_cast %114 : vector<1x8x32xf32> to vector<8x32xf32>
    %116 = tpu.concatenate %113, %115 in 1 : vector<8x32xf32>, vector<8x32xf32> -> vector<8x64xf32>
    %117 = arith.truncf %116 : vector<8x64xf32> to vector<8x64xbf16>
    %c0_92 = arith.constant 0 : index
    %c0_93 = arith.constant 0 : index
    %118 = vector.load %arg8[%c0_92, %c0_93] : memref<64x1024xbf16, #tpu.memory_space<vmem>>, vector<64x1024xbf16>
    %cst_94 = arith.constant dense<0.000000e+00> : vector<8x1024xf32>
    %119 = tpu.matmul %117, %118, %cst_94 {dimension_numbers = #tpu.dot_dimension_numbers<[1], [0], [0], [1], [0, 0, 1, 1], [], []>} : vector<8x64xbf16>, vector<64x1024xbf16>, vector<8x1024xf32> -> vector<8x1024xf32>
    %c0_95 = arith.constant 0 : index
    %c0_96 = arith.constant 0 : index
    %120 = vector.load %arg9[%c0_95, %c0_96] : memref<1x1024xf32, #tpu.memory_space<vmem>>, vector<1x1024xf32>
    %121 = vector.broadcast %120 : vector<1x1024xf32> to vector<8x1024xf32>
    %122 = arith.addf %119, %121 : vector<8x1024xf32>
    %cst_97 = arith.constant 0.000000e+00 : f32
    %123 = vector.broadcast %cst_97 : f32 to vector<8x1024xf32>
    %124 = arith.maximumf %122, %123 : vector<8x1024xf32>
    %c0_98 = arith.constant 0 : index
    %c0_99 = arith.constant 0 : index
    %125 = vector.load %arg10[%c0_98, %c0_99] : memref<1024x128xf32, #tpu.memory_space<vmem>>, vector<1024x128xf32>
    %cst_100 = arith.constant dense<0.000000e+00> : vector<8x128xf32>
    %126 = tpu.matmul %124, %125, %cst_100 {dimension_numbers = #tpu.dot_dimension_numbers<[1], [0], [0], [1], [0, 0, 1, 1], [], []>} : vector<8x1024xf32>, vector<1024x128xf32>, vector<8x128xf32> -> vector<8x128xf32>
    %c0_101 = arith.constant 0 : index
    %c0_102 = arith.constant 0 : index
    %127 = vector.load %arg11[%c0_101, %c0_102] : memref<1x128xf32, #tpu.memory_space<vmem>>, vector<1x128xf32>
    %128 = vector.broadcast %127 : vector<1x128xf32> to vector<8x128xf32>
    %129 = arith.addf %126, %128 : vector<8x128xf32>
    %c0_103 = arith.constant 0 : index
    %c0_104 = arith.constant 0 : index
    %c0_105 = arith.constant 0 : index
    %130 = vector.load %arg12[%c0_103, %c0_104, %c0_105] : memref<1x8x128xf32, #tpu.memory_space<vmem>>, vector<1x8x128xf32>
    %131 = vector.shape_cast %130 : vector<1x8x128xf32> to vector<8x128xf32>
    %132 = vector.shape_cast %129 : vector<8x128xf32> to vector<1x8x128xf32>
    tpu.vector_store %arg12[%c0_103, %c0_104, %c0_105], %132 {strides = array<i32>} : memref<1x8x128xf32, #tpu.memory_space<vmem>>, vector<1x8x128xf32>,
    return
  }
  func.func @transform_0(%arg0: i32) -> (i32, i32, i32, i32) {
    %c0_i32 = arith.constant 0 : i32
    %c0_i32_0 = arith.constant 0 : i32
    %c0_i32_1 = arith.constant 0 : i32
    %c0_i32_2 = arith.constant 0 : i32
    return %arg0, %c0_i32, %c0_i32_0, %c0_i32_1 : i32, i32, i32, i32
  }
  func.func @transform_1(%arg0: i32) -> (i32, i32, i32) {
    %c0_i32 = arith.constant 0 : i32
    %c0_i32_0 = arith.constant 0 : i32
    %c0_i32_1 = arith.constant 0 : i32
    %c0_i32_2 = arith.constant 0 : i32
    return %c0_i32, %c0_i32_0, %c0_i32_1 : i32, i32, i32
  }
  func.func @transform_2(%arg0: i32) -> (i32, i32) {
    %c0_i32 = arith.constant 0 : i32
    %c0_i32_0 = arith.constant 0 : i32
    %c0_i32_1 = arith.constant 0 : i32
    return %c0_i32, %c0_i32_0 : i32, i32
  }
  func.func @transform_3(%arg0: i32) -> (i32, i32, i32) {
    %c0_i32 = arith.constant 0 : i32
    %c0_i32_0 = arith.constant 0 : i32
    %c0_i32_1 = arith.constant 0 : i32
    %c0_i32_2 = arith.constant 0 : i32
    return %c0_i32, %c0_i32_0, %c0_i32_1 : i32, i32, i32
  }
  func.func @transform_4(%arg0: i32) -> (i32, i32) {
    %c0_i32 = arith.constant 0 : i32
    %c0_i32_0 = arith.constant 0 : i32
    %c0_i32_1 = arith.constant 0 : i32
    return %c0_i32, %c0_i32_0 : i32, i32
  }
  func.func @transform_5(%arg0: i32) -> (i32, i32, i32) {
    %c0_i32 = arith.constant 0 : i32
    %c0_i32_0 = arith.constant 0 : i32
    %c0_i32_1 = arith.constant 0 : i32
    %c0_i32_2 = arith.constant 0 : i32
    return %c0_i32, %c0_i32_0, %c0_i32_1 : i32, i32, i32
  }
  func.func @transform_6(%arg0: i32) -> (i32, i32) {
    %c0_i32 = arith.constant 0 : i32
    %c0_i32_0 = arith.constant 0 : i32
    %c0_i32_1 = arith.constant 0 : i32
    return %c0_i32, %c0_i32_0 : i32, i32
  }
  func.func @transform_7(%arg0: i32) -> (i32, i32) {
    %c0_i32 = arith.constant 0 : i32
    %c0_i32_0 = arith.constant 0 : i32
    %c0_i32_1 = arith.constant 0 : i32
    return %c0_i32, %c0_i32_0 : i32, i32
  }
  func.func @transform_8(%arg0: i32) -> (i32, i32) {
    %c0_i32 = arith.constant 0 : i32
    %c0_i32_0 = arith.constant 0 : i32
    %c0_i32_1 = arith.constant 0 : i32
    return %c0_i32, %c0_i32_0 : i32, i32
  }
  func.func @transform_9(%arg0: i32) -> (i32, i32) {
    %c0_i32 = arith.constant 0 : i32
    %c0_i32_0 = arith.constant 0 : i32
    %c0_i32_1 = arith.constant 0 : i32
    return %c0_i32, %c0_i32_0 : i32, i32
  }
  func.func @transform_10(%arg0: i32) -> (i32, i32) {
    %c0_i32 = arith.constant 0 : i32
    %c0_i32_0 = arith.constant 0 : i32
    %c0_i32_1 = arith.constant 0 : i32
    return %c0_i32, %c0_i32_0 : i32, i32
  }
  func.func @transform_11(%arg0: i32) -> (i32, i32, i32) {
    %c0_i32 = arith.constant 0 : i32
    %c0_i32_0 = arith.constant 0 : i32
    %c0_i32_1 = arith.constant 0 : i32
    return %arg0, %c0_i32, %c0_i32_0 : i32, i32, i32
  }
}

</mosaic_0001>

<llo_original>
// kernel: wide_cnn_forward.1
$region0: #{wide_cnn_forward.1}
  #allocation0 [shape = 'u32[]', space=smem, size = 0x4, offset = 0x4, fixed_abs, tag = 'smem constant byte address 0x4 - core index']
  #allocation1 [shape = 'u32[144,128]{1,0:T(1,128)}', space=vmem, size = 0x12000, scoped, tag = 'internal scratch']
  #allocation2 [shape = 'f32[10,8,64]{2,1,0:T(8,128)}', space=vmem, size = 0xa000, scoped, tag = 'scratch operand']
  #allocation3 [shape = 'f32[6,8,32]{2,1,0:T(8,128)}', space=vmem, size = 0x6000, scoped, tag = 'scratch operand']
  %s0 = inlined_call_operand.vmem [shape: f32[2,18,8,64], index: 0, kind: input, shape index: {}]
  %s1 = inlined_call_operand.vmem [shape: bf16[3,64,128], index: 1, kind: input, shape index: {}]
  %s2 = inlined_call_operand.vmem [shape: f32[1,128], index: 2, kind: input, shape index: {}]
  %s3 = inlined_call_operand.vmem [shape: bf16[3,64,64], index: 3, kind: input, shape index: {}]
  %s4 = inlined_call_operand.vmem [shape: f32[1,64], index: 4, kind: input, shape index: {}]
  %s5 = inlined_call_operand.vmem [shape: bf16[3,32,64], index: 5, kind: input, shape index: {}]
  %s6 = inlined_call_operand.vmem [shape: f32[1,64], index: 6, kind: input, shape index: {}]
  %s7 = inlined_call_operand.vmem [shape: bf16[64,1024], index: 7, kind: input, shape index: {}]
  %s8 = inlined_call_operand.vmem [shape: f32[1,1024], index: 8, kind: input, shape index: {}]
  %s9 = inlined_call_operand.vmem [shape: f32[1024,128], index: 9, kind: input, shape index: {}]
  %s10 = inlined_call_operand.vmem [shape: f32[1,128], index: 10, kind: input, shape index: {}]
  %s11 = inlined_call_operand.hbm [shape: f32[2,8,128], index: 11, kind: output, shape index: {}]
  %s12 = sld [smem:[#allocation0]]
  $region77: #{wide_cnn_forward.1} parent=0
    _
  %s14 = ssub.s32 1, %s12
  %s15 = scalar_select 0, %s14, %s12
  $region1: #{wide_cnn_forward.1} parent=0
    #allocation4 [shape = 'u8[8192]{0}', space=vmem, size = 0x2000, scoped, tag = 'output window, operand 0']
    #allocation5 [shape = 's32[2]{0}', space=sflag, size = 0x8, scoped, tag = 'scoped memory for wide_cnn_forward.1']
    %16 = vsyncpa [#allocation5], 0
    %s17 = scalar_lea.sflag [#allocation5], 1
    %18 = vsyncpa %s17, 0
    loop: start=0, step=1, limit=4
    $region2: #{wide_cnn_forward.1} parent=1 // loop_pre_header
      _
    $region3: #{wide_cnn_forward.1} parent=1 // loop_header
      %s20 = sphi 0, %s24
      %p21 = scmp.ge.s32.totalorder %s20, 4
      %s30 = sphi 0, %s32
      %s33 = sphi 0, %s30
      %s34 = sphi 0, %s33
      %s50 = sphi 0, %s34
      %s54 = sphi 0, %s54
      %s56 = sphi 0, %s54
      %s57 = sphi 0, %s56
      %s71 = sphi 0, %s57
      %s75 = sphi 0, %s75
      %s77 = sphi 0, %s75
      %s78 = sphi 0, %s77
      %s92 = sphi 0, %s78
      %s96 = sphi 0, %s96
      %s98 = sphi 0, %s96
      %s99 = sphi 0, %s98
      %s113 = sphi 0, %s99
      %s117 = sphi 0, %s117
      %s119 = sphi 0, %s117
      %s120 = sphi 0, %s119
      %s134 = sphi 0, %s120
      %s138 = sphi 0, %s138
      %s140 = sphi 0, %s138
      %s141 = sphi 0, %s140
      %s155 = sphi 0, %s141
      %s159 = sphi 0, %s159
      %s161 = sphi 0, %s159
      %s162 = sphi 0, %s161
      %s176 = sphi 0, %s162
      %s180 = sphi 0, %s180
      %s182 = sphi 0, %s180
      %s183 = sphi 0, %s182
      %s197 = sphi 0, %s183
      %s201 = sphi 0, %s201
      %s203 = sphi 0, %s201
      %s204 = sphi 0, %s203
      %s218 = sphi 0, %s204
      %s222 = sphi 0, %s222
      %s224 = sphi 0, %s222
      %s225 = sphi 0, %s224
      %s239 = sphi 0, %s225
      %s243 = sphi 0, %s243
      %s245 = sphi 0, %s243
      %s246 = sphi 0, %s245
      %s260 = sphi 0, %s246
      %s266 = sphi 0, %s268
      %s269 = sphi 0, %s266
      %s270 = sphi 0, %s269
      %s286 = sphi 0, %s270
    $region4: #{wide_cnn_forward.1} parent=1 // loop_header_branch
      %23 = sbr.rel (%p21) target = $region8
    $region5: #{wide_cnn_forward.1} parent=1 // loop_body
      %s25 = ssub.s32 %s20, 1
      %s26 = ssub.s32 %s20, 2
      %s27 = sadd.s32 %s20, 1
      %s28 = ssub.s32 %s20, %s27
      %p29 = scmp.eq.s32.totalorder %s28, 0
      %s31 = sadd.s32 %s30, 1
      %s32 = scalar_select %p29, %s30, %s31
      %p35 = pneg %p29
      %p36 = scmp.eq.s32.totalorder %s20, 1
      %p37 = por %p35, %p36
      %p38 = scmp.ne.s32.totalorder %s30, %s33
      %p39 = scmp.eq.s32.totalorder %s20, 0
      %p40 = por %p38, %p39
      %p41 = scmp.ne.s32.totalorder %s30, %s33
      %p42 = scmp.eq.s32.totalorder %s25, 1
      %p43 = por %p41, %p42
      %p44 = scmp.ne.s32.totalorder %s33, %s34
      %p45 = scmp.eq.s32.totalorder %s25, 0
      %p46 = por %p44, %p45
      %p47 = scmp.ne.s32.totalorder %s33, %s34
      %p48 = scmp.eq.s32.totalorder %s26, 1
      %p49 = por %p47, %p48
      %p51 = scmp.ne.s32.totalorder %s34, %s50
      %p52 = scmp.eq.s32.totalorder %s26, 0
      %p53 = por %p51, %p52
      %s55 = sadd.s32 %s54, 1
      %p58 = scmp.eq.s32.totalorder %s20, 1
      %p59 = scmp.ne.s32.totalorder %s54, %s56
      %p60 = scmp.eq.s32.totalorder %s20, 0
      %p61 = por %p59, %p60
      %p62 = scmp.ne.s32.totalorder %s54, %s56
      %p63 = scmp.eq.s32.totalorder %s25, 1
      %p64 = por %p62, %p63
      %p65 = scmp.ne.s32.totalorder %s56, %s57
      %p66 = scmp.eq.s32.totalorder %s25, 0
      %p67 = por %p65, %p66
      %p68 = scmp.ne.s32.totalorder %s56, %s57
      %p69 = scmp.eq.s32.totalorder %s26, 1
      %p70 = por %p68, %p69
      %p72 = scmp.ne.s32.totalorder %s57, %s71
      %p73 = scmp.eq.s32.totalorder %s26, 0
      %p74 = por %p72, %p73
      %s76 = sadd.s32 %s75, 1
      %p79 = scmp.eq.s32.totalorder %s20, 1
      %p80 = scmp.ne.s32.totalorder %s75, %s77
      %p81 = scmp.eq.s32.totalorder %s20, 0
      %p82 = por %p80, %p81
      %p83 = scmp.ne.s32.totalorder %s75, %s77
      %p84 = scmp.eq.s32.totalorder %s25, 1
      %p85 = por %p83, %p84
      %p86 = scmp.ne.s32.totalorder %s77, %s78
      %p87 = scmp.eq.s32.totalorder %s25, 0
      %p88 = por %p86, %p87
      %p89 = scmp.ne.s32.totalorder %s77, %s78
      %p90 = scmp.eq.s32.totalorder %s26, 1
      %p91 = por %p89, %p90
      %p93 = scmp.ne.s32.totalorder %s78, %s92
      %p94 = scmp.eq.s32.totalorder %s26, 0
      %p95 = por %p93, %p94
      %s97 = sadd.s32 %s96, 1
      %p100 = scmp.eq.s32.totalorder %s20, 1
      %p101 = scmp.ne.s32.totalorder %s96, %s98
      %p102 = scmp.eq.s32.totalorder %s20, 0
      %p103 = por %p101, %p102
      %p104 = scmp.ne.s32.totalorder %s96, %s98
      %p105 = scmp.eq.s32.totalorder %s25, 1
      %p106 = por %p104, %p105
      %p107 = scmp.ne.s32.totalorder %s98, %s99
      %p108 = scmp.eq.s32.totalorder %s25, 0
      %p109 = por %p107, %p108
      %p110 = scmp.ne.s32.totalorder %s98, %s99
      %p111 = scmp.eq.s32.totalorder %s26, 1
      %p112 = por %p110, %p111
      %p114 = scmp.ne.s32.totalorder %s99, %s113
      %p115 = scmp.eq.s32.totalorder %s26, 0
      %p116 = por %p114, %p115
      %s118 = sadd.s32 %s117, 1
      %p121 = scmp.eq.s32.totalorder %s20, 1
      %p122 = scmp.ne.s32.totalorder %s117, %s119
      %p123 = scmp.eq.s32.totalorder %s20, 0
      %p124 = por %p122, %p123
      %p125 = scmp.ne.s32.totalorder %s117, %s119
      %p126 = scmp.eq.s32.totalorder %s25, 1
      %p127 = por %p125, %p126
      %p128 = scmp.ne.s32.totalorder %s119, %s120
      %p129 = scmp.eq.s32.totalorder %s25, 0
      %p130 = por %p128, %p129
      %p131 = scmp.ne.s32.totalorder %s119, %s120
      %p132 = scmp.eq.s32.totalorder %s26, 1
      %p133 = por %p131, %p132
      %p135 = scmp.ne.s32.totalorder %s120, %s134
      %p136 = scmp.eq.s32.totalorder %s26, 0
      %p137 = por %p135, %p136
      %s139 = sadd.s32 %s138, 1
      %p142 = scmp.eq.s32.totalorder %s20, 1
      %p143 = scmp.ne.s32.totalorder %s138, %s140
      %p144 = scmp.eq.s32.totalorder %s20, 0
      %p145 = por %p143, %p144
      %p146 = scmp.ne.s32.totalorder %s138, %s140
      %p147 = scmp.eq.s32.totalorder %s25, 1
      %p148 = por %p146, %p147
      %p149 = scmp.ne.s32.totalorder %s140, %s141
      %p150 = scmp.eq.s32.totalorder %s25, 0
      %p151 = por %p149, %p150
      %p152 = scmp.ne.s32.totalorder %s140, %s141
      %p153 = scmp.eq.s32.totalorder %s26, 1
      %p154 = por %p152, %p153
      %p156 = scmp.ne.s32.totalorder %s141, %s155
      %p157 = scmp.eq.s32.totalorder %s26, 0
      %p158 = por %p156, %p157
      %s160 = sadd.s32 %s159, 1
      %p163 = scmp.eq.s32.totalorder %s20, 1
      %p164 = scmp.ne.s32.totalorder %s159, %s161
      %p165 = scmp.eq.s32.totalorder %s20, 0
      %p166 = por %p164, %p165
      %p167 = scmp.ne.s32.totalorder %s159, %s161
      %p168 = scmp.eq.s32.totalorder %s25, 1
      %p169 = por %p167, %p168
      %p170 = scmp.ne.s32.totalorder %s161, %s162
      %p171 = scmp.eq.s32.totalorder %s25, 0
      %p172 = por %p170, %p171
      %p173 = scmp.ne.s32.totalorder %s161, %s162
      %p174 = scmp.eq.s32.totalorder %s26, 1
      %p175 = por %p173, %p174
      %p177 = scmp.ne.s32.totalorder %s162, %s176
      %p178 = scmp.eq.s32.totalorder %s26, 0
      %p179 = por %p177, %p178
      %s181 = sadd.s32 %s180, 1
      %p184 = scmp.eq.s32.totalorder %s20, 1
      %p185 = scmp.ne.s32.totalorder %s180, %s182
      %p186 = scmp.eq.s32.totalorder %s20, 0
      %p187 = por %p185, %p186
      %p188 = scmp.ne.s32.totalorder %s180, %s182
      %p189 = scmp.eq.s32.totalorder %s25, 1
      %p190 = por %p188, %p189
      %p191 = scmp.ne.s32.totalorder %s182, %s183
      %p192 = scmp.eq.s32.totalorder %s25, 0
      %p193 = por %p191, %p192
      %p194 = scmp.ne.s32.totalorder %s182, %s183
      %p195 = scmp.eq.s32.totalorder %s26, 1
      %p196 = por %p194, %p195
      %p198 = scmp.ne.s32.totalorder %s183, %s197
      %p199 = scmp.eq.s32.totalorder %s26, 0
      %p200 = por %p198, %p199
      %s202 = sadd.s32 %s201, 1
      %p205 = scmp.eq.s32.totalorder %s20, 1
      %p206 = scmp.ne.s32.totalorder %s201, %s203
      %p207 = scmp.eq.s32.totalorder %s20, 0
      %p208 = por %p206, %p207
      %p209 = scmp.ne.s32.totalorder %s201, %s203
      %p210 = scmp.eq.s32.totalorder %s25, 1
      %p211 = por %p209, %p210
      %p212 = scmp.ne.s32.totalorder %s203, %s204
      %p213 = scmp.eq.s32.totalorder %s25, 0
      %p214 = por %p212, %p213
      %p215 = scmp.ne.s32.totalorder %s203, %s204
      %p216 = scmp.eq.s32.totalorder %s26, 1
      %p217 = por %p215, %p216
      %p219 = scmp.ne.s32.totalorder %s204, %s218
      %p220 = scmp.eq.s32.totalorder %s26, 0
      %p221 = por %p219, %p220
      %s223 = sadd.s32 %s222, 1
      %p226 = scmp.eq.s32.totalorder %s20, 1
      %p227 = scmp.ne.s32.totalorder %s222, %s224
      %p228 = scmp.eq.s32.totalorder %s20, 0
      %p229 = por %p227, %p228
      %p230 = scmp.ne.s32.totalorder %s222, %s224
      %p231 = scmp.eq.s32.totalorder %s25, 1
      %p232 = por %p230, %p231
      %p233 = scmp.ne.s32.totalorder %s224, %s225
      %p234 = scmp.eq.s32.totalorder %s25, 0
      %p235 = por %p233, %p234
      %p236 = scmp.ne.s32.totalorder %s224, %s225
      %p237 = scmp.eq.s32.totalorder %s26, 1
      %p238 = por %p236, %p237
      %p240 = scmp.ne.s32.totalorder %s225, %s239
      %p241 = scmp.eq.s32.totalorder %s26, 0
      %p242 = por %p240, %p241
      %s244 = sadd.s32 %s243, 1
      %p247 = scmp.eq.s32.totalorder %s20, 1
      %p248 = scmp.ne.s32.totalorder %s243, %s245
      %p249 = scmp.eq.s32.totalorder %s20, 0
      %p250 = por %p248, %p249
      %p251 = scmp.ne.s32.totalorder %s243, %s245
      %p252 = scmp.eq.s32.totalorder %s25, 1
      %p253 = por %p251, %p252
      %p254 = scmp.ne.s32.totalorder %s245, %s246
      %p255 = scmp.eq.s32.totalorder %s25, 0
      %p256 = por %p254, %p255
      %p257 = scmp.ne.s32.totalorder %s245, %s246
      %p258 = scmp.eq.s32.totalorder %s26, 1
      %p259 = por %p257, %p258
      %p261 = scmp.ne.s32.totalorder %s246, %s260
      %p262 = scmp.eq.s32.totalorder %s26, 0
      %p263 = por %p261, %p262
      %s264 = ssub.s32 %s20, %s27
      %p265 = scmp.eq.s32.totalorder %s264, 0
      %s267 = sadd.s32 %s266, 1
      %s268 = scalar_select %p265, %s266, %s267
      %p271 = pneg %p265
      %p272 = scmp.eq.s32.totalorder %s20, 1
      %p273 = por %p271, %p272
      %p274 = scmp.ne.s32.totalorder %s266, %s269
      %p275 = scmp.eq.s32.totalorder %s20, 0
      %p276 = por %p274, %p275
      %p277 = scmp.ne.s32.totalorder %s266, %s269
      %p278 = scmp.eq.s32.totalorder %s25, 1
      %p279 = por %p277, %p278
      %p280 = scmp.ne.s32.totalorder %s269, %s270
      %p281 = scmp.eq.s32.totalorder %s25, 0
      %p282 = por %p280, %p281
      %p283 = scmp.ne.s32.totalorder %s269, %s270
      %p284 = scmp.eq.s32.totalorder %s26, 1
      %p285 = por %p283, %p284
      %p287 = scmp.ne.s32.totalorder %s270, %s286
      %p288 = scmp.eq.s32.totalorder %s26, 0
      %p289 = por %p287, %p288
      %p290 = scmp.le.s32.totalorder 1, %s20
      %p291 = scmp.lt.s32.totalorder %s20, 3
      %p292 = pnand %p290, %p291
      %p293 = pneg %p292
      // Predicated region
      $region9: #{wide_cnn_forward.1} parent=5 // pred_check
        _
      $region10: #{wide_cnn_forward.1} parent=5 // pred_check_branch
        %295 = sbr.rel (%p292) target = $region12
      $region11: #{wide_cnn_forward.1} parent=5 // pred_region
        %s296 = ssub.s32 %s20, 1
        // Predicated region
        $region13: #{wide_cnn_forward.1} parent=11 // pred_check
          %p297 = pneg %p67
        $region14: #{wide_cnn_forward.1} parent=11 // pred_check_branch
          %299 = sbr.rel (%p297) target = $region16
        $region15: #{wide_cnn_forward.1} parent=11 // pred_region
          _
        $region16: #{wide_cnn_forward.1} parent=11 // pred_fallthru
          _
        // Predicated region
        $region17: #{wide_cnn_forward.1} parent=11 // pred_check
          %p300 = pneg %p88
        $region18: #{wide_cnn_forward.1} parent=11 // pred_check_branch
          %302 = sbr.rel (%p300) target = $region20
        $region19: #{wide_cnn_forward.1} parent=11 // pred_region
          _
        $region20: #{wide_cnn_forward.1} parent=11 // pred_fallthru
          _
        // Predicated region
        $region21: #{wide_cnn_forward.1} parent=11 // pred_check
          %p303 = pneg %p109
        $region22: #{wide_cnn_forward.1} parent=11 // pred_check_branch
          %305 = sbr.rel (%p303) target = $region24
        $region23: #{wide_cnn_forward.1} parent=11 // pred_region
          _
        $region24: #{wide_cnn_forward.1} parent=11 // pred_fallthru
          _
        // Predicated region
        $region25: #{wide_cnn_forward.1} parent=11 // pred_check
          %p306 = pneg %p130
        $region26: #{wide_cnn_forward.1} parent=11 // pred_check_branch
          %308 = sbr.rel (%p306) target = $region28
        $region27: #{wide_cnn_forward.1} parent=11 // pred_region
          _
        $region28: #{wide_cnn_forward.1} parent=11 // pred_fallthru
          _
        // Predicated region
        $region29: #{wide_cnn_forward.1} parent=11 // pred_check
          %p309 = pneg %p151
        $region30: #{wide_cnn_forward.1} parent=11 // pred_check_branch
          %311 = sbr.rel (%p309) target = $region32
        $region31: #{wide_cnn_forward.1} parent=11 // pred_region
          _
        $region32: #{wide_cnn_forward.1} parent=11 // pred_fallthru
          _
        // Predicated region
        $region33: #{wide_cnn_forward.1} parent=11 // pred_check
          %p312 = pneg %p172
        $region34: #{wide_cnn_forward.1} parent=11 // pred_check_branch
          %314 = sbr.rel (%p312) target = $region36
        $region35: #{wide_cnn_forward.1} parent=11 // pred_region
          _
        $region36: #{wide_cnn_forward.1} parent=11 // pred_fallthru
          _
        // Predicated region
        $region37: #{wide_cnn_forward.1} parent=11 // pred_check
          %p315 = pneg %p193
        $region38: #{wide_cnn_forward.1} parent=11 // pred_check_branch
          %317 = sbr.rel (%p315) target = $region40
        $region39: #{wide_cnn_forward.1} parent=11 // pred_region
          _
        $region40: #{wide_cnn_forward.1} parent=11 // pred_fallthru
          _
        // Predicated region
        $region41: #{wide_cnn_forward.1} parent=11 // pred_check
          %p318 = pneg %p214
        $region42: #{wide_cnn_forward.1} parent=11 // pred_check_branch
          %320 = sbr.rel (%p318) target = $region44
        $region43: #{wide_cnn_forward.1} parent=11 // pred_region
          _
        $region44: #{wide_cnn_forward.1} parent=11 // pred_fallthru
          _
        // Predicated region
        $region45: #{wide_cnn_forward.1} parent=11 // pred_check
          %p321 = pneg %p235
        $region46: #{wide_cnn_forward.1} parent=11 // pred_check_branch
          %323 = sbr.rel (%p321) target = $region48
        $region47: #{wide_cnn_forward.1} parent=11 // pred_region
          _
        $region48: #{wide_cnn_forward.1} parent=11 // pred_fallthru
          _
        // Predicated region
        $region49: #{wide_cnn_forward.1} parent=11 // pred_check
          %p324 = pneg %p256
        $region50: #{wide_cnn_forward.1} parent=11 // pred_check_branch
          %326 = sbr.rel (%p324) target = $region52
        $region51: #{wide_cnn_forward.1} parent=11 // pred_region
          _
        $region52: #{wide_cnn_forward.1} parent=11 // pred_fallthru
          _
      $region12: #{wide_cnn_forward.1} parent=5 // pred_fallthru
        _
      %p327 = scmp.lt.s32.totalorder %s20, 2
      // Predicated region
      $region53: #{wide_cnn_forward.1} parent=5 // pred_check
        %p328 = pneg %p327
      $region54: #{wide_cnn_forward.1} parent=5 // pred_check_branch
        %330 = sbr.rel (%p328) target = $region56
      $region55: #{wide_cnn_forward.1} parent=5 // pred_region
        // Predicated region
        $region57: #{wide_cnn_forward.1} parent=55 // pred_check
          %p331 = pneg %p40
        $region58: #{wide_cnn_forward.1} parent=55 // pred_check_branch
          %333 = sbr.rel (%p331) target = $region60
        $region59: #{wide_cnn_forward.1} parent=55 // pred_region
          %p334 = scmp.lt.s32.totalorder %s20, 1
          %s335 = scalar_select %p334, %s20, 1
          %s336 = smul.addr %s335, 18
          %s337 = smul.addr %s336, 8
          %s338 = scalar_lea.vmem %s0, %s337
        $region60: #{wide_cnn_forward.1} parent=55 // pred_fallthru
          _
      $region56: #{wide_cnn_forward.1} parent=5 // pred_fallthru
        _
      %p339 = scmp.le.s32.totalorder 1, %s20
      %p340 = scmp.lt.s32.totalorder %s20, 3
      %p341 = pnand %p339, %p340
      %p342 = pneg %p341
      // Predicated region
      $region61: #{wide_cnn_forward.1} parent=5 // pred_check
        _
      $region62: #{wide_cnn_forward.1} parent=5 // pred_check_branch
        %344 = sbr.rel (%p341) target = $region64
      $region63: #{wide_cnn_forward.1} parent=5 // pred_region
        %s345 = ssub.s32 %s20, 1
        %p346 = scmp.lt.s32.totalorder %s25, 1
        %s347 = scalar_select %p346, %s25, 1
        %s348 = smul.addr %s347, 18
        %s349 = smul.addr %s348, 8
        %s350 = scalar_lea.vmem %s0, %s349
        %p351 = pneg %p46
        %p352 = pneg %p43
        %p353 = pneg %p67
        %p354 = pneg %p64
        %p355 = pneg %p88
        %p356 = pneg %p85
        %p357 = pneg %p109
        %p358 = pneg %p106
        %p359 = pneg %p130
        %p360 = pneg %p127
        %p361 = pneg %p151
        %p362 = pneg %p148
        %p363 = pneg %p172
        %p364 = pneg %p169
        %p365 = pneg %p193
        %p366 = pneg %p190
        %p367 = pneg %p214
        %p368 = pneg %p211
        %p369 = pneg %p235
        %p370 = pneg %p232
        %p371 = pneg %p256
        %p372 = pneg %p253
        %p373 = pneg %p282
        %p374 = pneg %p279
        %s375 = sand.u32 %s269, 1
        %s376 = scalar_lea.sflag [#allocation5], %s375
        %s377 = sand.u32 %s269, 1
        %s378 = smul.addr %s377, 8
        %s379 = scalar_lea.vmem [#allocation4], %s378
        %p380 = scmp.lt.s32.totalorder %s25, 1
        %s381 = scalar_select %p380, %s25, 1
        %s382 = smul.addr %s381, 18
        %s383 = smul.addr %s382, 8
        %s384 = scalar_lea.vmem %s0, %s383
        %v386 = vld [vmem:[%s384] sm:$0xff]
        %v387 = vld [vmem:[%s384 + $0x8] sm:$0xff]
        %v388 = vld [vmem:[%s384 + $0x10] sm:$0xff]
        %v389 = vld [vmem:[%s384 + $0x18] sm:$0xff]
        %v390 = vld [vmem:[%s384 + $0x20] sm:$0xff]
        %v391 = vld [vmem:[%s384 + $0x28] sm:$0xff]
        %v392 = vld [vmem:[%s384 + $0x30] sm:$0xff]
        %v393 = vld [vmem:[%s384 + $0x38] sm:$0xff]
        %v394 = vld [vmem:[%s384 + $0x40] sm:$0xff]
        %v395 = vld [vmem:[%s384 + $0x48] sm:$0xff]
        %v396 = vld [vmem:[%s384 + $0x50] sm:$0xff]
        %v397 = vld [vmem:[%s384 + $0x58] sm:$0xff]
        %v398 = vld [vmem:[%s384 + $0x60] sm:$0xff]
        %v399 = vld [vmem:[%s384 + $0x68] sm:$0xff]
        %v400 = vld [vmem:[%s384 + $0x70] sm:$0xff]
        %v401 = vld [vmem:[%s384 + $0x78] sm:$0xff]
        %v402 = vpack.c.bf16 %v387, %v386
        %v403 = vpack.c.bf16 %v389, %v388
        %v404 = vpack.c.bf16 %v391, %v390
        %v405 = vpack.c.bf16 %v393, %v392
        %v406 = vpack.c.bf16 %v395, %v394
        %v407 = vpack.c.bf16 %v397, %v396
        %v408 = vpack.c.bf16 %v399, %v398
        %v409 = vpack.c.bf16 %v401, %v400
        %v410 = vld [vmem:[%s1] sm:$0xf]
        %v411 = vld [vmem:[%s1 + $0x4] sm:$0xf]
        %v412 = vld [vmem:[%s1 + $0x8] sm:$0xf]
        %v413 = vld [vmem:[%s1 + $0xc] sm:$0xf]
        %v414 = vld [vmem:[%s1 + $0x10] sm:$0xf]
        %v415 = vld [vmem:[%s1 + $0x14] sm:$0xf]
        %v416 = vld [vmem:[%s1 + $0x18] sm:$0xf]
        %v417 = vld [vmem:[%s1 + $0x1c] sm:$0xf]
        %s418 = scalar_lea.vmem %s384, 8
        %v419 = vld [vmem:[%s418] sm:$0xff]
        %v420 = vld [vmem:[%s418 + $0x8] sm:$0xff]
        %v421 = vld [vmem:[%s418 + $0x10] sm:$0xff]
        %v422 = vld [vmem:[%s418 + $0x18] sm:$0xff]
        %v423 = vld [vmem:[%s418 + $0x20] sm:$0xff]
        %v424 = vld [vmem:[%s418 + $0x28] sm:$0xff]
        %v425 = vld [vmem:[%s418 + $0x30] sm:$0xff]
        %v426 = vld [vmem:[%s418 + $0x38] sm:$0xff]
        %v427 = vld [vmem:[%s418 + $0x40] sm:$0xff]
        %v428 = vld [vmem:[%s418 + $0x48] sm:$0xff]
        %v429 = vld [vmem:[%s418 + $0x50] sm:$0xff]
        %v430 = vld [vmem:[%s418 + $0x58] sm:$0xff]
        %v431 = vld [vmem:[%s418 + $0x60] sm:$0xff]
        %v432 = vld [vmem:[%s418 + $0x68] sm:$0xff]
        %v433 = vld [vmem:[%s418 + $0x70] sm:$0xff]
        %v434 = vld [vmem:[%s418 + $0x78] sm:$0xff]
        %v435 = vpack.c.bf16 %v420, %v419
        %v436 = vpack.c.bf16 %v422, %v421
        %v437 = vpack.c.bf16 %v424, %v423
        %v438 = vpack.c.bf16 %v426, %v425
        %v439 = vpack.c.bf16 %v428, %v427
        %v440 = vpack.c.bf16 %v430, %v429
        %v441 = vpack.c.bf16 %v432, %v431
        %v442 = vpack.c.bf16 %v434, %v433
        %s443 = scalar_lea.vmem %s1, 32
        %v444 = vld [vmem:[%s443] sm:$0xf]
        %v445 = vld [vmem:[%s443 + $0x4] sm:$0xf]
        %v446 = vld [vmem:[%s443 + $0x8] sm:$0xf]
        %v447 = vld [vmem:[%s443 + $0xc] sm:$0xf]
        %v448 = vld [vmem:[%s443 + $0x10] sm:$0xf]
        %v449 = vld [vmem:[%s443 + $0x14] sm:$0xf]
        %v450 = vld [vmem:[%s443 + $0x18] sm:$0xf]
        %v451 = vld [vmem:[%s443 + $0x1c] sm:$0xf]
        %v460 = vunpack.c.l.b16 %v444
        %v461 = vunpack.c.l.b16 %v445
        %v462 = vunpack.c.l.b16 %v446
        %v463 = vunpack.c.l.b16 %v447
        %v464 = vunpack.c.l.b16 %v448
        %v465 = vunpack.c.l.b16 %v449
        %v466 = vunpack.c.l.b16 %v450
        %v467 = vunpack.c.l.b16 %v451
        %v468 = vpack.c.b16 %v461, %v460
        %v469 = vpack.c.b16 %v463, %v462
        %v470 = vpack.c.b16 %v465, %v464
        %v471 = vpack.c.b16 %v467, %v466
        %vm476 = vcmask 523264
        %v478 = vsel %vm476, %v435, 0
        %v481 = vsel %vm476, %v436, 0
        %v484 = vsel %vm476, %v437, 0
        %v487 = vsel %vm476, %v438, 0
        %v490 = vsel %vm476, %v439, 0
        %v493 = vsel %vm476, %v440, 0
        %v496 = vsel %vm476, %v441, 0
        %v499 = vsel %vm476, %v442, 0
        %501 = vmatprep.subr.bf16.mxu0 0
        %502 = vmatpush1.bf16.msra.mxu0 0
        %503 = vmatprep.subr.bf16.mxu0 0
        %504 = vmatpush1.bf16.msra.mxu0 0
        %505 = vmatprep.subr.bf16.mxu0 0
        %506 = vmatpush1.bf16.msra.mxu0 0
        %507 = vmatprep.subr.bf16.mxu0 0
        %508 = vmatpush1.bf16.msra.mxu0 0
        %509 = vmatprep.subr.bf16.mxu0 0
        %510 = vmatpush1.bf16.msra.mxu0 %v471
        %511 = vmatprep.subr.bf16.mxu0 0
        %512 = vmatpush1.bf16.msra.mxu0 %v470
        %513 = vmatprep.subr.bf16.mxu0 0
        %514 = vmatpush1.bf16.msra.mxu0 %v469
        %515 = vmatprep.subr.bf16.mxu0 0
        %516 = vmatpush1.bf16.msra.mxu0 %v468
        %517 = vmatprep.subr.bf16.mxu0 0
        %518 = vmatpush2.bf16.msra.mxu0 0
        %519 = vmatprep.subr.bf16.mxu0 0
        %520 = vmatpush2.bf16.msra.mxu0 0
        %521 = vmatprep.subr.bf16.mxu0 0
        %522 = vmatpush2.bf16.msra.mxu0 0
        %523 = vmatprep.subr.bf16.mxu0 0
        %524 = vmatpush2.bf16.msra.mxu0 0
        %525 = vmatprep.subr.bf16.mxu0 0
        %526 = vmatpush2.bf16.msra.mxu0 0
        %527 = vmatprep.subr.bf16.mxu0 0
        %528 = vmatpush2.bf16.msra.mxu0 0
        %529 = vmatprep.subr.bf16.mxu0 0
        %530 = vmatpush2.bf16.msra.mxu0 0
        %531 = vmatprep.subr.bf16.mxu0 0
        %532 = vmatpush2.bf16.msra.mxu0 0
        %533 = vmatprep.mubr.bf16.mxu0 0
        %534 = vmatmul.mubr.bf16.gmra.mxu0 %v478
        %v535 = vpop.f32.mrf.mxu0
        %v536 = vadd.f32 0.0, %v535
        %v537 = vpop.f32.mrf.mxu0
        %v538 = vpop.f32.mrf.mxu0
        %v539 = vadd.f32 0.0, %v538
        %v540 = vpop.f32.mrf.mxu0
        %541 = vmatprep.mubr.bf16.mxu0 0
        %542 = vmatmul.mubr.bf16.gmra.mxu0 %v481
        %v543 = vpop.f32.mrf.mxu0
        %v544 = vadd.f32 0.0, %v543
        %v545 = vpop.f32.mrf.mxu0
        %v546 = vpop.f32.mrf.mxu0
        %v547 = vadd.f32 0.0, %v546
        %v548 = vpop.f32.mrf.mxu0
        %549 = vmatprep.mubr.bf16.mxu0 0
        %550 = vmatmul.mubr.bf16.gmra.mxu0 %v484
        %v551 = vpop.f32.mrf.mxu0
        %v552 = vadd.f32 0.0, %v551
        %v553 = vpop.f32.mrf.mxu0
        %v554 = vpop.f32.mrf.mxu0
        %v555 = vadd.f32 0.0, %v554
        %v556 = vpop.f32.mrf.mxu0
        %557 = vmatprep.mubr.bf16.mxu0 0
        %558 = vmatmul.mubr.bf16.gmra.mxu0 %v487
        %v559 = vpop.f32.mrf.mxu0
        %v560 = vadd.f32 0.0, %v559
        %v561 = vpop.f32.mrf.mxu0
        %v562 = vpop.f32.mrf.mxu0
        %v563 = vadd.f32 0.0, %v562
        %v564 = vpop.f32.mrf.mxu0
        %565 = vmatprep.mubr.bf16.mxu0 0
        %566 = vmatmul.mubr.bf16.gmra.mxu0 %v490
        %v567 = vpop.f32.mrf.mxu0
        %v568 = vadd.f32 0.0, %v567
        %v569 = vpop.f32.mrf.mxu0
        %v570 = vpop.f32.mrf.mxu0
        %v571 = vadd.f32 0.0, %v570
        %v572 = vpop.f32.mrf.mxu0
        %573 = vmatprep.mubr.bf16.mxu0 0
        %574 = vmatmul.mubr.bf16.gmra.mxu0 %v493
        %v575 = vpop.f32.mrf.mxu0
        %v576 = vadd.f32 0.0, %v575
        %v577 = vpop.f32.mrf.mxu0
        %v578 = vpop.f32.mrf.mxu0
        %v579 = vadd.f32 0.0, %v578
        %v580 = vpop.f32.mrf.mxu0
        %581 = vmatprep.mubr.bf16.mxu0 0
        %582 = vmatmul.mubr.bf16.gmra.mxu0 %v496
        %v583 = vpop.f32.mrf.mxu0
        %v584 = vadd.f32 0.0, %v583
        %v585 = vpop.f32.mrf.mxu0
        %v586 = vpop.f32.mrf.mxu0
        %v587 = vadd.f32 0.0, %v586
        %v588 = vpop.f32.mrf.mxu0
        %589 = vmatprep.mubr.bf16.mxu0 0
        %590 = vmatmul.mubr.bf16.gmra.mxu0 %v499
        %v591 = vpop.f32.mrf.mxu0
        %v592 = vadd.f32 0.0, %v591
        %v593 = vpop.f32.mrf.mxu0
        %v594 = vpop.f32.mrf.mxu0
        %v595 = vadd.f32 0.0, %v594
        %v596 = vpop.f32.mrf.mxu0
        %597 = vdwg.mxu0
        %v606 = vunpack.c.l.b16 %v410
        %v607 = vunpack.c.l.b16 %v411
        %v608 = vunpack.c.l.b16 %v412
        %v609 = vunpack.c.l.b16 %v413
        %v610 = vunpack.c.l.b16 %v414
        %v611 = vunpack.c.l.b16 %v415
        %v612 = vunpack.c.l.b16 %v416
        %v613 = vunpack.c.l.b16 %v417
        %v614 = vpack.c.b16 %v607, %v606
        %v615 = vpack.c.b16 %v609, %v608
        %v616 = vpack.c.b16 %v611, %v610
        %v617 = vpack.c.b16 %v613, %v612
        %v623 = vsel %vm476, %v402, 0
        %v626 = vsel %vm476, %v403, 0
        %v629 = vsel %vm476, %v404, 0
        %v632 = vsel %vm476, %v405, 0
        %v635 = vsel %vm476, %v406, 0
        %v638 = vsel %vm476, %v407, 0
        %v641 = vsel %vm476, %v408, 0
        %v644 = vsel %vm476, %v409, 0
        %646 = vmatprep.subr.bf16.mxu0 0
        %647 = vmatpush1.bf16.msra.mxu0 0
        %648 = vmatprep.subr.bf16.mxu0 0
        %649 = vmatpush1.bf16.msra.mxu0 0
        %650 = vmatprep.subr.bf16.mxu0 0
        %651 = vmatpush1.bf16.msra.mxu0 0
        %652 = vmatprep.subr.bf16.mxu0 0
        %653 = vmatpush1.bf16.msra.mxu0 0
        %654 = vmatprep.subr.bf16.mxu0 0
        %655 = vmatpush1.bf16.msra.mxu0 %v617
        %656 = vmatprep.subr.bf16.mxu0 0
        %657 = vmatpush1.bf16.msra.mxu0 %v616
        %658 = vmatprep.subr.bf16.mxu0 0
        %659 = vmatpush1.bf16.msra.mxu0 %v615
        %660 = vmatprep.subr.bf16.mxu0 0
        %661 = vmatpush1.bf16.msra.mxu0 %v614
        %662 = vmatprep.subr.bf16.mxu0 0
        %663 = vmatpush2.bf16.msra.mxu0 0
        %664 = vmatprep.subr.bf16.mxu0 0
        %665 = vmatpush2.bf16.msra.mxu0 0
        %666 = vmatprep.subr.bf16.mxu0 0
        %667 = vmatpush2.bf16.msra.mxu0 0
        %668 = vmatprep.subr.bf16.mxu0 0
        %669 = vmatpush2.bf16.msra.mxu0 0
        %670 = vmatprep.subr.bf16.mxu0 0
        %671 = vmatpush2.bf16.msra.mxu0 0
        %672 = vmatprep.subr.bf16.mxu0 0
        %673 = vmatpush2.bf16.msra.mxu0 0
        %674 = vmatprep.subr.bf16.mxu0 0
        %675 = vmatpush2.bf16.msra.mxu0 0
        %676 = vmatprep.subr.bf16.mxu0 0
        %677 = vmatpush2.bf16.msra.mxu0 0
        %678 = vmatprep.mubr.bf16.mxu0 0
        %679 = vmatmul.mubr.bf16.gmra.mxu0 %v623
        %v680 = vpop.f32.mrf.mxu0
        %v681 = vadd.f32 %v536, %v680
        %v682 = vpop.f32.mrf.mxu0
        %v683 = vpop.f32.mrf.mxu0
        %v684 = vadd.f32 %v539, %v683
        %v685 = vpop.f32.mrf.mxu0
        %686 = vmatprep.mubr.bf16.mxu0 0
        %687 = vmatmul.mubr.bf16.gmra.mxu0 %v626
        %v688 = vpop.f32.mrf.mxu0
        %v689 = vadd.f32 %v544, %v688
        %v690 = vpop.f32.mrf.mxu0
        %v691 = vpop.f32.mrf.mxu0
        %v692 = vadd.f32 %v547, %v691
        %v693 = vpop.f32.mrf.mxu0
        %694 = vmatprep.mubr.bf16.mxu0 0
        %695 = vmatmul.mubr.bf16.gmra.mxu0 %v629
        %v696 = vpop.f32.mrf.mxu0
        %v697 = vadd.f32 %v552, %v696
        %v698 = vpop.f32.mrf.mxu0
        %v699 = vpop.f32.mrf.mxu0
        %v700 = vadd.f32 %v555, %v699
        %v701 = vpop.f32.mrf.mxu0
        %702 = vmatprep.mubr.bf16.mxu0 0
        %703 = vmatmul.mubr.bf16.gmra.mxu0 %v632
        %v704 = vpop.f32.mrf.mxu0
        %v705 = vadd.f32 %v560, %v704
        %v706 = vpop.f32.mrf.mxu0
        %v707 = vpop.f32.mrf.mxu0
        %v708 = vadd.f32 %v563, %v707
        %v709 = vpop.f32.mrf.mxu0
        %710 = vmatprep.mubr.bf16.mxu0 0
        %711 = vmatmul.mubr.bf16.gmra.mxu0 %v635
        %v712 = vpop.f32.mrf.mxu0
        %v713 = vadd.f32 %v568, %v712
        %v714 = vpop.f32.mrf.mxu0
        %v715 = vpop.f32.mrf.mxu0
        %v716 = vadd.f32 %v571, %v715
        %v717 = vpop.f32.mrf.mxu0
        %718 = vmatprep.mubr.bf16.mxu0 0
        %719 = vmatmul.mubr.bf16.gmra.mxu0 %v638
        %v720 = vpop.f32.mrf.mxu0
        %v721 = vadd.f32 %v576, %v720
        %v722 = vpop.f32.mrf.mxu0
        %v723 = vpop.f32.mrf.mxu0
        %v724 = vadd.f32 %v579, %v723
        %v725 = vpop.f32.mrf.mxu0
        %726 = vmatprep.mubr.bf16.mxu0 0
        %727 = vmatmul.mubr.bf16.gmra.mxu0 %v641
        %v728 = vpop.f32.mrf.mxu0
        %v729 = vadd.f32 %v584, %v728
        %v730 = vpop.f32.mrf.mxu0
        %v731 = vpop.f32.mrf.mxu0
        %v732 = vadd.f32 %v587, %v731
        %v733 = vpop.f32.mrf.mxu0
        %734 = vmatprep.mubr.bf16.mxu0 0
        %735 = vmatmul.mubr.bf16.gmra.mxu0 %v644
        %v736 = vpop.f32.mrf.mxu0
        %v737 = vadd.f32 %v592, %v736
        %v738 = vpop.f32.mrf.mxu0
        %v739 = vpop.f32.mrf.mxu0
        %v740 = vadd.f32 %v595, %v739
        %v741 = vpop.f32.mrf.mxu0
        %742 = vdwg.mxu0
        %s743 = scalar_lea.vmem %s384, 16
        %v744 = vld [vmem:[%s743] sm:$0xff]
        %v745 = vld [vmem:[%s743 + $0x8] sm:$0xff]
        %v746 = vld [vmem:[%s743 + $0x10] sm:$0xff]
        %v747 = vld [vmem:[%s743 + $0x18] sm:$0xff]
        %v748 = vld [vmem:[%s743 + $0x20] sm:$0xff]
        %v749 = vld [vmem:[%s743 + $0x28] sm:$0xff]
        %v750 = vld [vmem:[%s743 + $0x30] sm:$0xff]
        %v751 = vld [vmem:[%s743 + $0x38] sm:$0xff]
        %v752 = vld [vmem:[%s743 + $0x40] sm:$0xff]
        %v753 = vld [vmem:[%s743 + $0x48] sm:$0xff]
        %v754 = vld [vmem:[%s743 + $0x50] sm:$0xff]
        %v755 = vld [vmem:[%s743 + $0x58] sm:$0xff]
        %v756 = vld [vmem:[%s743 + $0x60] sm:$0xff]
        %v757 = vld [vmem:[%s743 + $0x68] sm:$0xff]
        %v758 = vld [vmem:[%s743 + $0x70] sm:$0xff]
        %v759 = vld [vmem:[%s743 + $0x78] sm:$0xff]
        %v760 = vpack.c.bf16 %v745, %v744
        %v761 = vpack.c.bf16 %v747, %v746
        %v762 = vpack.c.bf16 %v749, %v748
        %v763 = vpack.c.bf16 %v751, %v750
        %v764 = vpack.c.bf16 %v753, %v752
        %v765 = vpack.c.bf16 %v755, %v754
        %v766 = vpack.c.bf16 %v757, %v756
        %v767 = vpack.c.bf16 %v759, %v758
        %s768 = scalar_lea.vmem %s1, 64
        %v769 = vld [vmem:[%s768] sm:$0xf]
        %v770 = vld [vmem:[%s768 + $0x4] sm:$0xf]
        %v771 = vld [vmem:[%s768 + $0x8] sm:$0xf]
        %v772 = vld [vmem:[%s768 + $0xc] sm:$0xf]
        %v773 = vld [vmem:[%s768 + $0x10] sm:$0xf]
        %v774 = vld [vmem:[%s768 + $0x14] sm:$0xf]
        %v775 = vld [vmem:[%s768 + $0x18] sm:$0xf]
        %v776 = vld [vmem:[%s768 + $0x1c] sm:$0xf]
        %v785 = vunpack.c.l.b16 %v769
        %v786 = vunpack.c.l.b16 %v770
        %v787 = vunpack.c.l.b16 %v771
        %v788 = vunpack.c.l.b16 %v772
        %v789 = vunpack.c.l.b16 %v773
        %v790 = vunpack.c.l.b16 %v774
        %v791 = vunpack.c.l.b16 %v775
        %v792 = vunpack.c.l.b16 %v776
        %v793 = vpack.c.b16 %v786, %v785
        %v794 = vpack.c.b16 %v788, %v787
        %v795 = vpack.c.b16 %v790, %v789
        %v796 = vpack.c.b16 %v792, %v791
        %v802 = vsel %vm476, %v760, 0
        %v805 = vsel %vm476, %v761, 0
        %v808 = vsel %vm476, %v762, 0
        %v811 = vsel %vm476, %v763, 0
        %v814 = vsel %vm476, %v764, 0
        %v817 = vsel %vm476, %v765, 0
        %v820 = vsel %vm476, %v766, 0
        %v823 = vsel %vm476, %v767, 0
        %825 = vmatprep.subr.bf16.mxu0 0
        %826 = vmatpush1.bf16.msra.mxu0 0
        %827 = vmatprep.subr.bf16.mxu0 0
        %828 = vmatpush1.bf16.msra.mxu0 0
        %829 = vmatprep.subr.bf16.mxu0 0
        %830 = vmatpush1.bf16.msra.mxu0 0
        %831 = vmatprep.subr.bf16.mxu0 0
        %832 = vmatpush1.bf16.msra.mxu0 0
        %833 = vmatprep.subr.bf16.mxu0 0
        %834 = vmatpush1.bf16.msra.mxu0 %v796
        %835 = vmatprep.subr.bf16.mxu0 0
        %836 = vmatpush1.bf16.msra.mxu0 %v795
        %837 = vmatprep.subr.bf16.mxu0 0
        %838 = vmatpush1.bf16.msra.mxu0 %v794
        %839 = vmatprep.subr.bf16.mxu0 0
        %840 = vmatpush1.bf16.msra.mxu0 %v793
        %841 = vmatprep.subr.bf16.mxu0 0
        %842 = vmatpush2.bf16.msra.mxu0 0
        %843 = vmatprep.subr.bf16.mxu0 0
        %844 = vmatpush2.bf16.msra.mxu0 0
        %845 = vmatprep.subr.bf16.mxu0 0
        %846 = vmatpush2.bf16.msra.mxu0 0
        %847 = vmatprep.subr.bf16.mxu0 0
        %848 = vmatpush2.bf16.msra.mxu0 0
        %849 = vmatprep.subr.bf16.mxu0 0
        %850 = vmatpush2.bf16.msra.mxu0 0
        %851 = vmatprep.subr.bf16.mxu0 0
        %852 = vmatpush2.bf16.msra.mxu0 0
        %853 = vmatprep.subr.bf16.mxu0 0
        %854 = vmatpush2.bf16.msra.mxu0 0
        %855 = vmatprep.subr.bf16.mxu0 0
        %856 = vmatpush2.bf16.msra.mxu0 0
        %857 = vmatprep.mubr.bf16.mxu0 0
        %858 = vmatmul.mubr.bf16.gmra.mxu0 %v802
        %v859 = vpop.f32.mrf.mxu0
        %v860 = vadd.f32 0.0, %v859
        %v861 = vpop.f32.mrf.mxu0
        %v862 = vpop.f32.mrf.mxu0
        %v863 = vadd.f32 0.0, %v862
        %v864 = vpop.f32.mrf.mxu0
        %865 = vmatprep.mubr.bf16.mxu0 0
        %866 = vmatmul.mubr.bf16.gmra.mxu0 %v805
        %v867 = vpop.f32.mrf.mxu0
        %v868 = vadd.f32 0.0, %v867
        %v869 = vpop.f32.mrf.mxu0
        %v870 = vpop.f32.mrf.mxu0
        %v871 = vadd.f32 0.0, %v870
        %v872 = vpop.f32.mrf.mxu0
        %873 = vmatprep.mubr.bf16.mxu0 0
        %874 = vmatmul.mubr.bf16.gmra.mxu0 %v808
        %v875 = vpop.f32.mrf.mxu0
        %v876 = vadd.f32 0.0, %v875
        %v877 = vpop.f32.mrf.mxu0
        %v878 = vpop.f32.mrf.mxu0
        %v879 = vadd.f32 0.0, %v878
        %v880 = vpop.f32.mrf.mxu0
        %881 = vmatprep.mubr.bf16.mxu0 0
        %882 = vmatmul.mubr.bf16.gmra.mxu0 %v811
        %v883 = vpop.f32.mrf.mxu0
        %v884 = vadd.f32 0.0, %v883
        %v885 = vpop.f32.mrf.mxu0
        %v886 = vpop.f32.mrf.mxu0
        %v887 = vadd.f32 0.0, %v886
        %v888 = vpop.f32.mrf.mxu0
        %889 = vmatprep.mubr.bf16.mxu0 0
        %890 = vmatmul.mubr.bf16.gmra.mxu0 %v814
        %v891 = vpop.f32.mrf.mxu0
        %v892 = vadd.f32 0.0, %v891
        %v893 = vpop.f32.mrf.mxu0
        %v894 = vpop.f32.mrf.mxu0
        %v895 = vadd.f32 0.0, %v894
        %v896 = vpop.f32.mrf.mxu0
        %897 = vmatprep.mubr.bf16.mxu0 0
        %898 = vmatmul.mubr.bf16.gmra.mxu0 %v817
        %v899 = vpop.f32.mrf.mxu0
        %v900 = vadd.f32 0.0, %v899
        %v901 = vpop.f32.mrf.mxu0
        %v902 = vpop.f32.mrf.mxu0
        %v903 = vadd.f32 0.0, %v902
        %v904 = vpop.f32.mrf.mxu0
        %905 = vmatprep.mubr.bf16.mxu0 0
        %906 = vmatmul.mubr.bf16.gmra.mxu0 %v820
        %v907 = vpop.f32.mrf.mxu0
        %v908 = vadd.f32 0.0, %v907
        %v909 = vpop.f32.mrf.mxu0
        %v910 = vpop.f32.mrf.mxu0
        %v911 = vadd.f32 0.0, %v910
        %v912 = vpop.f32.mrf.mxu0
        %913 = vmatprep.mubr.bf16.mxu0 0
        %914 = vmatmul.mubr.bf16.gmra.mxu0 %v823
        %v915 = vpop.f32.mrf.mxu0
        %v916 = vadd.f32 0.0, %v915
        %v917 = vpop.f32.mrf.mxu0
        %v918 = vpop.f32.mrf.mxu0
        %v919 = vadd.f32 0.0, %v918
        %v920 = vpop.f32.mrf.mxu0
        %921 = vdwg.mxu0
        %v922 = vadd.f32 %v681, %v860
        %v923 = vadd.f32 %v684, %v863
        %v924 = vadd.f32 %v689, %v868
        %v925 = vadd.f32 %v692, %v871
        %v926 = vadd.f32 %v697, %v876
        %v927 = vadd.f32 %v700, %v879
        %v928 = vadd.f32 %v705, %v884
        %v929 = vadd.f32 %v708, %v887
        %v930 = vadd.f32 %v713, %v892
        %v931 = vadd.f32 %v716, %v895
        %v932 = vadd.f32 %v721, %v900
        %v933 = vadd.f32 %v724, %v903
        %v934 = vadd.f32 %v729, %v908
        %v935 = vadd.f32 %v732, %v911
        %v936 = vadd.f32 %v737, %v916
        %v937 = vadd.f32 %v740, %v919
        %v938 = vld [vmem:[%s2] sm:$0x1]
        %v940 = vlaneseq
        %v941 = vshrl.u32 %v940, 7
        %v942 = vsub.s32 0, %v941
        %v943 = vrot.slane %v938, %v942
        %v945 = vadd.f32 %v922, %v943
        %v946 = vadd.f32 %v923, %v943
        %v947 = vadd.f32 %v924, %v943
        %v948 = vadd.f32 %v925, %v943
        %v949 = vadd.f32 %v926, %v943
        %v950 = vadd.f32 %v927, %v943
        %v951 = vadd.f32 %v928, %v943
        %v952 = vadd.f32 %v929, %v943
        %v953 = vadd.f32 %v930, %v943
        %v954 = vadd.f32 %v931, %v943
        %v955 = vadd.f32 %v932, %v943
        %v956 = vadd.f32 %v933, %v943
        %v957 = vadd.f32 %v934, %v943
        %v958 = vadd.f32 %v935, %v943
        %v959 = vadd.f32 %v936, %v943
        %v960 = vadd.f32 %v937, %v943
        %v961 = vmax.f32 %v945, 0.0
        %v962 = vmax.f32 %v946, 0.0
        %v963 = vmax.f32 %v947, 0.0
        %v964 = vmax.f32 %v948, 0.0
        %v965 = vmax.f32 %v949, 0.0
        %v966 = vmax.f32 %v950, 0.0
        %v967 = vmax.f32 %v951, 0.0
        %v968 = vmax.f32 %v952, 0.0
        %v969 = vmax.f32 %v953, 0.0
        %v970 = vmax.f32 %v954, 0.0
        %v971 = vmax.f32 %v955, 0.0
        %v972 = vmax.f32 %v956, 0.0
        %v973 = vmax.f32 %v957, 0.0
        %v974 = vmax.f32 %v958, 0.0
        %v975 = vmax.f32 %v959, 0.0
        %v976 = vmax.f32 %v960, 0.0
        %993 = vrot.lane.b32.xlu0 %v961, 64
        %v994 = vpop.permute.xlu0 %993
        %995 = vrot.lane.b32.xlu0 %v962, 64
        %v996 = vpop.permute.xlu0 %995
        %997 = vrot.lane.b32.xlu0 %v963, 64
        %v998 = vpop.permute.xlu0 %997
        %999 = vrot.lane.b32.xlu0 %v964, 64
        %v1000 = vpop.permute.xlu0 %999
        %1001 = vrot.lane.b32.xlu0 %v965, 64
        %v1002 = vpop.permute.xlu0 %1001
        %1003 = vrot.lane.b32.xlu0 %v966, 64
        %v1004 = vpop.permute.xlu0 %1003
        %1005 = vrot.lane.b32.xlu0 %v967, 64
        %v1006 = vpop.permute.xlu0 %1005
        %1007 = vrot.lane.b32.xlu0 %v968, 64
        %v1008 = vpop.permute.xlu0 %1007
        %1009 = vrot.lane.b32.xlu0 %v969, 64
        %v1010 = vpop.permute.xlu0 %1009
        %1011 = vrot.lane.b32.xlu0 %v970, 64
        %v1012 = vpop.permute.xlu0 %1011
        %1013 = vrot.lane.b32.xlu0 %v971, 64
        %v1014 = vpop.permute.xlu0 %1013
        %1015 = vrot.lane.b32.xlu0 %v972, 64
        %v1016 = vpop.permute.xlu0 %1015
        %1017 = vrot.lane.b32.xlu0 %v973, 64
        %v1018 = vpop.permute.xlu0 %1017
        %1019 = vrot.lane.b32.xlu0 %v974, 64
        %v1020 = vpop.permute.xlu0 %1019
        %1021 = vrot.lane.b32.xlu0 %v975, 64
        %v1022 = vpop.permute.xlu0 %1021
        %1023 = vrot.lane.b32.xlu0 %v976, 64
        %v1024 = vpop.permute.xlu0 %1023
        %v1041 = vmax.f32 %v961, %v994
        %v1042 = vmax.f32 %v962, %v996
        %v1043 = vmax.f32 %v963, %v998
        %v1044 = vmax.f32 %v964, %v1000
        %v1045 = vmax.f32 %v965, %v1002
        %v1046 = vmax.f32 %v966, %v1004
        %v1047 = vmax.f32 %v967, %v1006
        %v1048 = vmax.f32 %v968, %v1008
        %v1049 = vmax.f32 %v969, %v1010
        %v1050 = vmax.f32 %v970, %v1012
        %v1051 = vmax.f32 %v971, %v1014
        %v1052 = vmax.f32 %v972, %v1016
        %v1053 = vmax.f32 %v973, %v1018
        %v1054 = vmax.f32 %v974, %v1020
        %v1055 = vmax.f32 %v975, %v1022
        %v1056 = vmax.f32 %v976, %v1024
        %v1057 = vsel %vm476, %v1041, -inf
        %v1058 = vsel %vm476, %v1042, -inf
        %v1059 = vmax.f32 %v1057, %v1058
        %v1060 = vsel %vm476, %v1043, -inf
        %v1061 = vsel %vm476, %v1044, -inf
        %v1062 = vmax.f32 %v1060, %v1061
        %v1063 = vsel %vm476, %v1045, -inf
        %v1064 = vsel %vm476, %v1046, -inf
        %v1065 = vmax.f32 %v1063, %v1064
        %v1066 = vsel %vm476, %v1047, -inf
        %v1067 = vsel %vm476, %v1048, -inf
        %v1068 = vmax.f32 %v1066, %v1067
        %v1069 = vsel %vm476, %v1049, -inf
        %v1070 = vsel %vm476, %v1050, -inf
        %v1071 = vmax.f32 %v1069, %v1070
        %v1072 = vsel %vm476, %v1051, -inf
        %v1073 = vsel %vm476, %v1052, -inf
        %v1074 = vmax.f32 %v1072, %v1073
        %v1075 = vsel %vm476, %v1053, -inf
        %v1076 = vsel %vm476, %v1054, -inf
        %v1077 = vmax.f32 %v1075, %v1076
        %v1078 = vsel %vm476, %v1055, -inf
        %v1079 = vsel %vm476, %v1056, -inf
        %v1080 = vmax.f32 %v1078, %v1079
        %1081 = vst.msk [vmem:[#allocation2] sm:$0xff] %vm476, 0.0
        %s1082 = scalar_lea.vmem [#allocation2], 72
        %1083 = vst.msk [vmem:[%s1082] sm:$0xff] %vm476, 0.0
        %s1084 = scalar_lea.vmem [#allocation2], 8
        %1085 = vst.msk [vmem:[%s1084] sm:$0xff] %vm476, %v1059
        %1086 = vst.msk [vmem:[%s1084 + $0x8] sm:$0xff] %vm476, %v1062
        %1087 = vst.msk [vmem:[%s1084 + $0x10] sm:$0xff] %vm476, %v1065
        %1088 = vst.msk [vmem:[%s1084 + $0x18] sm:$0xff] %vm476, %v1068
        %1089 = vst.msk [vmem:[%s1084 + $0x20] sm:$0xff] %vm476, %v1071
        %1090 = vst.msk [vmem:[%s1084 + $0x28] sm:$0xff] %vm476, %v1074
        %1091 = vst.msk [vmem:[%s1084 + $0x30] sm:$0xff] %vm476, %v1077
        %1092 = vst.msk [vmem:[%s1084 + $0x38] sm:$0xff] %vm476, %v1080
        %v1093 = vld [vmem:[#allocation2] sm:$0xff]
        %v1094 = vld [vmem:[#allocation2 + $0x8] sm:$0xff]
        %v1095 = vld [vmem:[#allocation2 + $0x10] sm:$0xff]
        %v1096 = vld [vmem:[#allocation2 + $0x18] sm:$0xff]
        %v1097 = vld [vmem:[#allocation2 + $0x20] sm:$0xff]
        %v1098 = vld [vmem:[#allocation2 + $0x28] sm:$0xff]
        %v1099 = vld [vmem:[#allocation2 + $0x30] sm:$0xff]
        %v1100 = vld [vmem:[#allocation2 + $0x38] sm:$0xff]
        %v1101 = vpack.c.bf16 %v1094, %v1093
        %v1102 = vpack.c.bf16 %v1096, %v1095
        %v1103 = vpack.c.bf16 %v1098, %v1097
        %v1104 = vpack.c.bf16 %v1100, %v1099
        %v1105 = vld [vmem:[%s3] sm:$0xf]
        %v1106 = vld [vmem:[%s3 + $0x4] sm:$0xf]
        %v1107 = vld [vmem:[%s3 + $0x8] sm:$0xf]
        %v1108 = vld [vmem:[%s3 + $0xc] sm:$0xf]
        %v1109 = vld [vmem:[%s3 + $0x10] sm:$0xf]
        %v1110 = vld [vmem:[%s3 + $0x14] sm:$0xf]
        %v1111 = vld [vmem:[%s3 + $0x18] sm:$0xf]
        %v1112 = vld [vmem:[%s3 + $0x1c] sm:$0xf]
        %v1113 = vld [vmem:[%s1084] sm:$0xff]
        %v1114 = vld [vmem:[%s1084 + $0x8] sm:$0xff]
        %v1115 = vld [vmem:[%s1084 + $0x10] sm:$0xff]
        %v1116 = vld [vmem:[%s1084 + $0x18] sm:$0xff]
        %v1117 = vld [vmem:[%s1084 + $0x20] sm:$0xff]
        %v1118 = vld [vmem:[%s1084 + $0x28] sm:$0xff]
        %v1119 = vld [vmem:[%s1084 + $0x30] sm:$0xff]
        %v1120 = vld [vmem:[%s1084 + $0x38] sm:$0xff]
        %v1121 = vpack.c.bf16 %v1114, %v1113
        %v1122 = vpack.c.bf16 %v1116, %v1115
        %v1123 = vpack.c.bf16 %v1118, %v1117
        %v1124 = vpack.c.bf16 %v1120, %v1119
        %s1125 = scalar_lea.vmem %s3, 32
        %v1126 = vld [vmem:[%s1125] sm:$0xf]
        %v1127 = vld [vmem:[%s1125 + $0x4] sm:$0xf]
        %v1128 = vld [vmem:[%s1125 + $0x8] sm:$0xf]
        %v1129 = vld [vmem:[%s1125 + $0xc] sm:$0xf]
        %v1130 = vld [vmem:[%s1125 + $0x10] sm:$0xf]
        %v1131 = vld [vmem:[%s1125 + $0x14] sm:$0xf]
        %v1132 = vld [vmem:[%s1125 + $0x18] sm:$0xf]
        %v1133 = vld [vmem:[%s1125 + $0x1c] sm:$0xf]
        %v1142 = vunpack.c.l.b16 %v1126
        %v1143 = vunpack.c.l.b16 %v1127
        %v1144 = vunpack.c.l.b16 %v1128
        %v1145 = vunpack.c.l.b16 %v1129
        %v1146 = vunpack.c.l.b16 %v1130
        %v1147 = vunpack.c.l.b16 %v1131
        %v1148 = vunpack.c.l.b16 %v1132
        %v1149 = vunpack.c.l.b16 %v1133
        %v1150 = vpack.c.b16 %v1143, %v1142
        %v1151 = vpack.c.b16 %v1145, %v1144
        %v1152 = vpack.c.b16 %v1147, %v1146
        %v1153 = vpack.c.b16 %v1149, %v1148
        %v1159 = vsel %vm476, %v1121, 0
        %v1162 = vsel %vm476, %v1122, 0
        %v1165 = vsel %vm476, %v1123, 0
        %v1168 = vsel %vm476, %v1124, 0
        %1170 = vmatprep.subr.bf16.mxu0 0
        %1171 = vmatpush1.bf16.msra.mxu0 0
        %1172 = vmatprep.subr.bf16.mxu0 0
        %1173 = vmatpush1.bf16.msra.mxu0 0
        %1174 = vmatprep.subr.bf16.mxu0 0
        %1175 = vmatpush1.bf16.msra.mxu0 0
        %1176 = vmatprep.subr.bf16.mxu0 0
        %1177 = vmatpush1.bf16.msra.mxu0 0
        %1178 = vmatprep.subr.bf16.mxu0 0
        %1179 = vmatpush1.bf16.msra.mxu0 %v1153
        %1180 = vmatprep.subr.bf16.mxu0 0
        %1181 = vmatpush1.bf16.msra.mxu0 %v1152
        %1182 = vmatprep.subr.bf16.mxu0 0
        %1183 = vmatpush1.bf16.msra.mxu0 %v1151
        %1184 = vmatprep.subr.bf16.mxu0 0
        %1185 = vmatpush1.bf16.msra.mxu0 %v1150
        %1186 = vmatprep.subr.bf16.mxu0 0
        %1187 = vmatpush2.bf16.msra.mxu0 0
        %1188 = vmatprep.subr.bf16.mxu0 0
        %1189 = vmatpush2.bf16.msra.mxu0 0
        %1190 = vmatprep.subr.bf16.mxu0 0
        %1191 = vmatpush2.bf16.msra.mxu0 0
        %1192 = vmatprep.subr.bf16.mxu0 0
        %1193 = vmatpush2.bf16.msra.mxu0 0
        %1194 = vmatprep.subr.bf16.mxu0 0
        %1195 = vmatpush2.bf16.msra.mxu0 0
        %1196 = vmatprep.subr.bf16.mxu0 0
        %1197 = vmatpush2.bf16.msra.mxu0 0
        %1198 = vmatprep.subr.bf16.mxu0 0
        %1199 = vmatpush2.bf16.msra.mxu0 0
        %1200 = vmatprep.subr.bf16.mxu0 0
        %1201 = vmatpush2.bf16.msra.mxu0 0
        %1202 = vmatprep.mubr.bf16.mxu0 0
        %1203 = vmatmul.mubr.bf16.gmra.mxu0 %v1159
        %v1204 = vpop.f32.mrf.mxu0
        %v1205 = vadd.f32 0.0, %v1204
        %v1206 = vpop.f32.mrf.mxu0
        %v1207 = vpop.f32.mrf.mxu0
        %v1208 = vadd.f32 0.0, %v1207
        %v1209 = vpop.f32.mrf.mxu0
        %1210 = vmatprep.mubr.bf16.mxu0 0
        %1211 = vmatmul.mubr.bf16.gmra.mxu0 %v1162
        %v1212 = vpop.f32.mrf.mxu0
        %v1213 = vadd.f32 0.0, %v1212
        %v1214 = vpop.f32.mrf.mxu0
        %v1215 = vpop.f32.mrf.mxu0
        %v1216 = vadd.f32 0.0, %v1215
        %v1217 = vpop.f32.mrf.mxu0
        %1218 = vmatprep.mubr.bf16.mxu0 0
        %1219 = vmatmul.mubr.bf16.gmra.mxu0 %v1165
        %v1220 = vpop.f32.mrf.mxu0
        %v1221 = vadd.f32 0.0, %v1220
        %v1222 = vpop.f32.mrf.mxu0
        %v1223 = vpop.f32.mrf.mxu0
        %v1224 = vadd.f32 0.0, %v1223
        %v1225 = vpop.f32.mrf.mxu0
        %1226 = vmatprep.mubr.bf16.mxu0 0
        %1227 = vmatmul.mubr.bf16.gmra.mxu0 %v1168
        %v1228 = vpop.f32.mrf.mxu0
        %v1229 = vadd.f32 0.0, %v1228
        %v1230 = vpop.f32.mrf.mxu0
        %v1231 = vpop.f32.mrf.mxu0
        %v1232 = vadd.f32 0.0, %v1231
        %v1233 = vpop.f32.mrf.mxu0
        %1234 = vdwg.mxu0
        %v1243 = vunpack.c.l.b16 %v1105
        %v1244 = vunpack.c.l.b16 %v1106
        %v1245 = vunpack.c.l.b16 %v1107
        %v1246 = vunpack.c.l.b16 %v1108
        %v1247 = vunpack.c.l.b16 %v1109
        %v1248 = vunpack.c.l.b16 %v1110
        %v1249 = vunpack.c.l.b16 %v1111
        %v1250 = vunpack.c.l.b16 %v1112
        %v1251 = vpack.c.b16 %v1244, %v1243
        %v1252 = vpack.c.b16 %v1246, %v1245
        %v1253 = vpack.c.b16 %v1248, %v1247
        %v1254 = vpack.c.b16 %v1250, %v1249
        %v1260 = vsel %vm476, %v1101, 0
        %v1263 = vsel %vm476, %v1102, 0
        %v1266 = vsel %vm476, %v1103, 0
        %v1269 = vsel %vm476, %v1104, 0
        %1271 = vmatprep.subr.bf16.mxu0 0
        %1272 = vmatpush1.bf16.msra.mxu0 0
        %1273 = vmatprep.subr.bf16.mxu0 0
        %1274 = vmatpush1.bf16.msra.mxu0 0
        %1275 = vmatprep.subr.bf16.mxu0 0
        %1276 = vmatpush1.bf16.msra.mxu0 0
        %1277 = vmatprep.subr.bf16.mxu0 0
        %1278 = vmatpush1.bf16.msra.mxu0 0
        %1279 = vmatprep.subr.bf16.mxu0 0
        %1280 = vmatpush1.bf16.msra.mxu0 %v1254
        %1281 = vmatprep.subr.bf16.mxu0 0
        %1282 = vmatpush1.bf16.msra.mxu0 %v1253
        %1283 = vmatprep.subr.bf16.mxu0 0
        %1284 = vmatpush1.bf16.msra.mxu0 %v1252
        %1285 = vmatprep.subr.bf16.mxu0 0
        %1286 = vmatpush1.bf16.msra.mxu0 %v1251
        %1287 = vmatprep.subr.bf16.mxu0 0
        %1288 = vmatpush2.bf16.msra.mxu0 0
        %1289 = vmatprep.subr.bf16.mxu0 0
        %1290 = vmatpush2.bf16.msra.mxu0 0
        %1291 = vmatprep.subr.bf16.mxu0 0
        %1292 = vmatpush2.bf16.msra.mxu0 0
        %1293 = vmatprep.subr.bf16.mxu0 0
        %1294 = vmatpush2.bf16.msra.mxu0 0
        %1295 = vmatprep.subr.bf16.mxu0 0
        %1296 = vmatpush2.bf16.msra.mxu0 0
        %1297 = vmatprep.subr.bf16.mxu0 0
        %1298 = vmatpush2.bf16.msra.mxu0 0
        %1299 = vmatprep.subr.bf16.mxu0 0
        %1300 = vmatpush2.bf16.msra.mxu0 0
        %1301 = vmatprep.subr.bf16.mxu0 0
        %1302 = vmatpush2.bf16.msra.mxu0 0
        %1303 = vmatprep.mubr.bf16.mxu0 0
        %1304 = vmatmul.mubr.bf16.gmra.mxu0 %v1260
        %v1305 = vpop.f32.mrf.mxu0
        %v1306 = vadd.f32 %v1205, %v1305
        %v1307 = vpop.f32.mrf.mxu0
        %v1308 = vpop.f32.mrf.mxu0
        %v1309 = vadd.f32 %v1208, %v1308
        %v1310 = vpop.f32.mrf.mxu0
        %1311 = vmatprep.mubr.bf16.mxu0 0
        %1312 = vmatmul.mubr.bf16.gmra.mxu0 %v1263
        %v1313 = vpop.f32.mrf.mxu0
        %v1314 = vadd.f32 %v1213, %v1313
        %v1315 = vpop.f32.mrf.mxu0
        %v1316 = vpop.f32.mrf.mxu0
        %v1317 = vadd.f32 %v1216, %v1316
        %v1318 = vpop.f32.mrf.mxu0
        %1319 = vmatprep.mubr.bf16.mxu0 0
        %1320 = vmatmul.mubr.bf16.gmra.mxu0 %v1266
        %v1321 = vpop.f32.mrf.mxu0
        %v1322 = vadd.f32 %v1221, %v1321
        %v1323 = vpop.f32.mrf.mxu0
        %v1324 = vpop.f32.mrf.mxu0
        %v1325 = vadd.f32 %v1224, %v1324
        %v1326 = vpop.f32.mrf.mxu0
        %1327 = vmatprep.mubr.bf16.mxu0 0
        %1328 = vmatmul.mubr.bf16.gmra.mxu0 %v1269
        %v1329 = vpop.f32.mrf.mxu0
        %v1330 = vadd.f32 %v1229, %v1329
        %v1331 = vpop.f32.mrf.mxu0
        %v1332 = vpop.f32.mrf.mxu0
        %v1333 = vadd.f32 %v1232, %v1332
        %v1334 = vpop.f32.mrf.mxu0
        %1335 = vdwg.mxu0
        %s1336 = scalar_lea.vmem [#allocation2], 16
        %v1337 = vld [vmem:[%s1336] sm:$0xff]
        %v1338 = vld [vmem:[%s1336 + $0x8] sm:$0xff]
        %v1339 = vld [vmem:[%s1336 + $0x10] sm:$0xff]
        %v1340 = vld [vmem:[%s1336 + $0x18] sm:$0xff]
        %v1341 = vld [vmem:[%s1336 + $0x20] sm:$0xff]
        %v1342 = vld [vmem:[%s1336 + $0x28] sm:$0xff]
        %v1343 = vld [vmem:[%s1336 + $0x30] sm:$0xff]
        %v1344 = vld [vmem:[%s1336 + $0x38] sm:$0xff]
        %v1345 = vpack.c.bf16 %v1338, %v1337
        %v1346 = vpack.c.bf16 %v1340, %v1339
        %v1347 = vpack.c.bf16 %v1342, %v1341
        %v1348 = vpack.c.bf16 %v1344, %v1343
        %s1349 = scalar_lea.vmem %s3, 64
        %v1350 = vld [vmem:[%s1349] sm:$0xf]
        %v1351 = vld [vmem:[%s1349 + $0x4] sm:$0xf]
        %v1352 = vld [vmem:[%s1349 + $0x8] sm:$0xf]
        %v1353 = vld [vmem:[%s1349 + $0xc] sm:$0xf]
        %v1354 = vld [vmem:[%s1349 + $0x10] sm:$0xf]
        %v1355 = vld [vmem:[%s1349 + $0x14] sm:$0xf]
        %v1356 = vld [vmem:[%s1349 + $0x18] sm:$0xf]
        %v1357 = vld [vmem:[%s1349 + $0x1c] sm:$0xf]
        %v1366 = vunpack.c.l.b16 %v1350
        %v1367 = vunpack.c.l.b16 %v1351
        %v1368 = vunpack.c.l.b16 %v1352
        %v1369 = vunpack.c.l.b16 %v1353
        %v1370 = vunpack.c.l.b16 %v1354
        %v1371 = vunpack.c.l.b16 %v1355
        %v1372 = vunpack.c.l.b16 %v1356
        %v1373 = vunpack.c.l.b16 %v1357
        %v1374 = vpack.c.b16 %v1367, %v1366
        %v1375 = vpack.c.b16 %v1369, %v1368
        %v1376 = vpack.c.b16 %v1371, %v1370
        %v1377 = vpack.c.b16 %v1373, %v1372
        %v1383 = vsel %vm476, %v1345, 0
        %v1386 = vsel %vm476, %v1346, 0
        %v1389 = vsel %vm476, %v1347, 0
        %v1392 = vsel %vm476, %v1348, 0
        %1394 = vmatprep.subr.bf16.mxu0 0
        %1395 = vmatpush1.bf16.msra.mxu0 0
        %1396 = vmatprep.subr.bf16.mxu0 0
        %1397 = vmatpush1.bf16.msra.mxu0 0
        %1398 = vmatprep.subr.bf16.mxu0 0
        %1399 = vmatpush1.bf16.msra.mxu0 0
        %1400 = vmatprep.subr.bf16.mxu0 0
        %1401 = vmatpush1.bf16.msra.mxu0 0
        %1402 = vmatprep.subr.bf16.mxu0 0
        %1403 = vmatpush1.bf16.msra.mxu0 %v1377
        %1404 = vmatprep.subr.bf16.mxu0 0
        %1405 = vmatpush1.bf16.msra.mxu0 %v1376
        %1406 = vmatprep.subr.bf16.mxu0 0
        %1407 = vmatpush1.bf16.msra.mxu0 %v1375
        %1408 = vmatprep.subr.bf16.mxu0 0
        %1409 = vmatpush1.bf16.msra.mxu0 %v1374
        %1410 = vmatprep.subr.bf16.mxu0 0
        %1411 = vmatpush2.bf16.msra.mxu0 0
        %1412 = vmatprep.subr.bf16.mxu0 0
        %1413 = vmatpush2.bf16.msra.mxu0 0
        %1414 = vmatprep.subr.bf16.mxu0 0
        %1415 = vmatpush2.bf16.msra.mxu0 0
        %1416 = vmatprep.subr.bf16.mxu0 0
        %1417 = vmatpush2.bf16.msra.mxu0 0
        %1418 = vmatprep.subr.bf16.mxu0 0
        %1419 = vmatpush2.bf16.msra.mxu0 0
        %1420 = vmatprep.subr.bf16.mxu0 0
        %1421 = vmatpush2.bf16.msra.mxu0 0
        %1422 = vmatprep.subr.bf16.mxu0 0
        %1423 = vmatpush2.bf16.msra.mxu0 0
        %1424 = vmatprep.subr.bf16.mxu0 0
        %1425 = vmatpush2.bf16.msra.mxu0 0
        %1426 = vmatprep.mubr.bf16.mxu0 0
        %1427 = vmatmul.mubr.bf16.gmra.mxu0 %v1383
        %v1428 = vpop.f32.mrf.mxu0
        %v1429 = vadd.f32 0.0, %v1428
        %v1430 = vpop.f32.mrf.mxu0
        %v1431 = vpop.f32.mrf.mxu0
        %v1432 = vadd.f32 0.0, %v1431
        %v1433 = vpop.f32.mrf.mxu0
        %1434 = vmatprep.mubr.bf16.mxu0 0
        %1435 = vmatmul.mubr.bf16.gmra.mxu0 %v1386
        %v1436 = vpop.f32.mrf.mxu0
        %v1437 = vadd.f32 0.0, %v1436
        %v1438 = vpop.f32.mrf.mxu0
        %v1439 = vpop.f32.mrf.mxu0
        %v1440 = vadd.f32 0.0, %v1439
        %v1441 = vpop.f32.mrf.mxu0
        %1442 = vmatprep.mubr.bf16.mxu0 0
        %1443 = vmatmul.mubr.bf16.gmra.mxu0 %v1389
        %v1444 = vpop.f32.mrf.mxu0
        %v1445 = vadd.f32 0.0, %v1444
        %v1446 = vpop.f32.mrf.mxu0
        %v1447 = vpop.f32.mrf.mxu0
        %v1448 = vadd.f32 0.0, %v1447
        %v1449 = vpop.f32.mrf.mxu0
        %1450 = vmatprep.mubr.bf16.mxu0 0
        %1451 = vmatmul.mubr.bf16.gmra.mxu0 %v1392
        %v1452 = vpop.f32.mrf.mxu0
        %v1453 = vadd.f32 0.0, %v1452
        %v1454 = vpop.f32.mrf.mxu0
        %v1455 = vpop.f32.mrf.mxu0
        %v1456 = vadd.f32 0.0, %v1455
        %v1457 = vpop.f32.mrf.mxu0
        %1458 = vdwg.mxu0
        %v1459 = vadd.f32 %v1306, %v1429
        %v1460 = vadd.f32 %v1309, %v1432
        %v1461 = vadd.f32 %v1314, %v1437
        %v1462 = vadd.f32 %v1317, %v1440
        %v1463 = vadd.f32 %v1322, %v1445
        %v1464 = vadd.f32 %v1325, %v1448
        %v1465 = vadd.f32 %v1330, %v1453
        %v1466 = vadd.f32 %v1333, %v1456
        %v1467 = vld [vmem:[%s4] sm:$0x1]
        %v1469 = vlaneseq
        %v1470 = vshrl.u32 %v1469, 7
        %v1471 = vsub.s32 0, %v1470
        %v1472 = vrot.slane %v1467, %v1471
        %v1474 = vadd.f32 %v1459, %v1472
        %v1475 = vadd.f32 %v1460, %v1472
        %v1476 = vadd.f32 %v1461, %v1472
        %v1477 = vadd.f32 %v1462, %v1472
        %v1478 = vadd.f32 %v1463, %v1472
        %v1479 = vadd.f32 %v1464, %v1472
        %v1480 = vadd.f32 %v1465, %v1472
        %v1481 = vadd.f32 %v1466, %v1472
        %v1482 = vmax.f32 %v1474, 0.0
        %v1483 = vmax.f32 %v1475, 0.0
        %v1484 = vmax.f32 %v1476, 0.0
        %v1485 = vmax.f32 %v1477, 0.0
        %v1486 = vmax.f32 %v1478, 0.0
        %v1487 = vmax.f32 %v1479, 0.0
        %v1488 = vmax.f32 %v1480, 0.0
        %v1489 = vmax.f32 %v1481, 0.0
        %1498 = vrot.lane.b32.xlu0 %v1482, 96
        %v1499 = vpop.permute.xlu0 %1498
        %1500 = vrot.lane.b32.xlu0 %v1483, 96
        %v1501 = vpop.permute.xlu0 %1500
        %1502 = vrot.lane.b32.xlu0 %v1484, 96
        %v1503 = vpop.permute.xlu0 %1502
        %1504 = vrot.lane.b32.xlu0 %v1485, 96
        %v1505 = vpop.permute.xlu0 %1504
        %1506 = vrot.lane.b32.xlu0 %v1486, 96
        %v1507 = vpop.permute.xlu0 %1506
        %1508 = vrot.lane.b32.xlu0 %v1487, 96
        %v1509 = vpop.permute.xlu0 %1508
        %1510 = vrot.lane.b32.xlu0 %v1488, 96
        %v1511 = vpop.permute.xlu0 %1510
        %1512 = vrot.lane.b32.xlu0 %v1489, 96
        %v1513 = vpop.permute.xlu0 %1512
        %v1522 = vmax.f32 %v1482, %v1499
        %v1523 = vmax.f32 %v1483, %v1501
        %v1524 = vmax.f32 %v1484, %v1503
        %v1525 = vmax.f32 %v1485, %v1505
        %v1526 = vmax.f32 %v1486, %v1507
        %v1527 = vmax.f32 %v1487, %v1509
        %v1528 = vmax.f32 %v1488, %v1511
        %v1529 = vmax.f32 %v1489, %v1513
        %vm1530 = vcmask 261120
        %v1531 = vsel %vm1530, %v1522, -inf
        %v1532 = vsel %vm1530, %v1523, -inf
        %v1533 = vmax.f32 %v1531, %v1532
        %v1534 = vsel %vm1530, %v1524, -inf
        %v1535 = vsel %vm1530, %v1525, -inf
        %v1536 = vmax.f32 %v1534, %v1535
        %v1537 = vsel %vm1530, %v1526, -inf
        %v1538 = vsel %vm1530, %v1527, -inf
        %v1539 = vmax.f32 %v1537, %v1538
        %v1540 = vsel %vm1530, %v1528, -inf
        %v1541 = vsel %vm1530, %v1529, -inf
        %v1542 = vmax.f32 %v1540, %v1541
        %1543 = vst.msk [vmem:[#allocation3] sm:$0xff] %vm1530, 0.0
        %s1544 = scalar_lea.vmem [#allocation3], 40
        %1545 = vst.msk [vmem:[%s1544] sm:$0xff] %vm1530, 0.0
        %s1546 = scalar_lea.vmem [#allocation3], 8
        %1547 = vst.msk [vmem:[%s1546] sm:$0xff] %vm1530, %v1533
        %1548 = vst.msk [vmem:[%s1546 + $0x8] sm:$0xff] %vm1530, %v1536
        %1549 = vst.msk [vmem:[%s1546 + $0x10] sm:$0xff] %vm1530, %v1539
        %1550 = vst.msk [vmem:[%s1546 + $0x18] sm:$0xff] %vm1530, %v1542
        %v1551 = vld [vmem:[#allocation3] sm:$0xff]
        %v1552 = vld [vmem:[#allocation3 + $0x8] sm:$0xff]
        %v1553 = vld [vmem:[#allocation3 + $0x10] sm:$0xff]
        %v1554 = vld [vmem:[#allocation3 + $0x18] sm:$0xff]
        %v1555 = vpack.c.bf16 %v1552, %v1551
        %v1556 = vpack.c.bf16 %v1554, %v1553
        %v1557 = vld [vmem:[%s5] sm:$0xf]
        %v1558 = vld [vmem:[%s5 + $0x4] sm:$0xf]
        %v1559 = vld [vmem:[%s5 + $0x8] sm:$0xf]
        %v1560 = vld [vmem:[%s5 + $0xc] sm:$0xf]
        %v1561 = vld [vmem:[%s1546] sm:$0xff]
        %v1562 = vld [vmem:[%s1546 + $0x8] sm:$0xff]
        %v1563 = vld [vmem:[%s1546 + $0x10] sm:$0xff]
        %v1564 = vld [vmem:[%s1546 + $0x18] sm:$0xff]
        %v1565 = vpack.c.bf16 %v1562, %v1561
        %v1566 = vpack.c.bf16 %v1564, %v1563
        %s1567 = scalar_lea.vmem %s5, 16
        %v1568 = vld [vmem:[%s1567] sm:$0xf]
        %v1569 = vld [vmem:[%s1567 + $0x4] sm:$0xf]
        %v1570 = vld [vmem:[%s1567 + $0x8] sm:$0xf]
        %v1571 = vld [vmem:[%s1567 + $0xc] sm:$0xf]
        %v1576 = vunpack.c.l.b16 %v1568
        %v1577 = vunpack.c.l.b16 %v1569
        %v1578 = vunpack.c.l.b16 %v1570
        %v1579 = vunpack.c.l.b16 %v1571
        %v1580 = vpack.c.b16 %v1577, %v1576
        %v1581 = vpack.c.b16 %v1579, %v1578
        %v1585 = vsel %vm1530, %v1565, 0
        %v1588 = vsel %vm1530, %v1566, 0
        %1590 = vmatprep.subr.bf16.mxu0 0
        %1591 = vmatpush1.bf16.msra.mxu0 0
        %1592 = vmatprep.subr.bf16.mxu0 0
        %1593 = vmatpush1.bf16.msra.mxu0 0
        %1594 = vmatprep.subr.bf16.mxu0 0
        %1595 = vmatpush1.bf16.msra.mxu0 0
        %1596 = vmatprep.subr.bf16.mxu0 0
        %1597 = vmatpush1.bf16.msra.mxu0 0
        %1598 = vmatprep.subr.bf16.mxu0 0
        %1599 = vmatpush1.bf16.msra.mxu0 0
        %1600 = vmatprep.subr.bf16.mxu0 0
        %1601 = vmatpush1.bf16.msra.mxu0 0
        %1602 = vmatprep.subr.bf16.mxu0 0
        %1603 = vmatpush1.bf16.msra.mxu0 %v1581
        %1604 = vmatprep.subr.bf16.mxu0 0
        %1605 = vmatpush1.bf16.msra.mxu0 %v1580
        %1606 = vmatprep.subr.bf16.mxu0 0
        %1607 = vmatpush2.bf16.msra.mxu0 0
        %1608 = vmatprep.subr.bf16.mxu0 0
        %1609 = vmatpush2.bf16.msra.mxu0 0
        %1610 = vmatprep.subr.bf16.mxu0 0
        %1611 = vmatpush2.bf16.msra.mxu0 0
        %1612 = vmatprep.subr.bf16.mxu0 0
        %1613 = vmatpush2.bf16.msra.mxu0 0
        %1614 = vmatprep.subr.bf16.mxu0 0
        %1615 = vmatpush2.bf16.msra.mxu0 0
        %1616 = vmatprep.subr.bf16.mxu0 0
        %1617 = vmatpush2.bf16.msra.mxu0 0
        %1618 = vmatprep.subr.bf16.mxu0 0
        %1619 = vmatpush2.bf16.msra.mxu0 0
        %1620 = vmatprep.subr.bf16.mxu0 0
        %1621 = vmatpush2.bf16.msra.mxu0 0
        %1622 = vmatprep.mubr.bf16.mxu0 0
        %1623 = vmatmul.mubr.bf16.gmra.mxu0 %v1585
        %v1624 = vpop.f32.mrf.mxu0
        %v1625 = vadd.f32 0.0, %v1624
        %v1626 = vpop.f32.mrf.mxu0
        %v1627 = vpop.f32.mrf.mxu0
        %v1628 = vadd.f32 0.0, %v1627
        %v1629 = vpop.f32.mrf.mxu0
        %1630 = vmatprep.mubr.bf16.mxu0 0
        %1631 = vmatmul.mubr.bf16.gmra.mxu0 %v1588
        %v1632 = vpop.f32.mrf.mxu0
        %v1633 = vadd.f32 0.0, %v1632
        %v1634 = vpop.f32.mrf.mxu0
        %v1635 = vpop.f32.mrf.mxu0
        %v1636 = vadd.f32 0.0, %v1635
        %v1637 = vpop.f32.mrf.mxu0
        %1638 = vdwg.mxu0
        %v1643 = vunpack.c.l.b16 %v1557
        %v1644 = vunpack.c.l.b16 %v1558
        %v1645 = vunpack.c.l.b16 %v1559
        %v1646 = vunpack.c.l.b16 %v1560
        %v1647 = vpack.c.b16 %v1644, %v1643
        %v1648 = vpack.c.b16 %v1646, %v1645
        %v1652 = vsel %vm1530, %v1555, 0
        %v1655 = vsel %vm1530, %v1556, 0
        %1657 = vmatprep.subr.bf16.mxu0 0
        %1658 = vmatpush1.bf16.msra.mxu0 0
        %1659 = vmatprep.subr.bf16.mxu0 0
        %1660 = vmatpush1.bf16.msra.mxu0 0
        %1661 = vmatprep.subr.bf16.mxu0 0
        %1662 = vmatpush1.bf16.msra.mxu0 0
        %1663 = vmatprep.subr.bf16.mxu0 0
        %1664 = vmatpush1.bf16.msra.mxu0 0
        %1665 = vmatprep.subr.bf16.mxu0 0
        %1666 = vmatpush1.bf16.msra.mxu0 0
        %1667 = vmatprep.subr.bf16.mxu0 0
        %1668 = vmatpush1.bf16.msra.mxu0 0
        %1669 = vmatprep.subr.bf16.mxu0 0
        %1670 = vmatpush1.bf16.msra.mxu0 %v1648
        %1671 = vmatprep.subr.bf16.mxu0 0
        %1672 = vmatpush1.bf16.msra.mxu0 %v1647
        %1673 = vmatprep.subr.bf16.mxu0 0
        %1674 = vmatpush2.bf16.msra.mxu0 0
        %1675 = vmatprep.subr.bf16.mxu0 0
        %1676 = vmatpush2.bf16.msra.mxu0 0
        %1677 = vmatprep.subr.bf16.mxu0 0
        %1678 = vmatpush2.bf16.msra.mxu0 0
        %1679 = vmatprep.subr.bf16.mxu0 0
        %1680 = vmatpush2.bf16.msra.mxu0 0
        %1681 = vmatprep.subr.bf16.mxu0 0
        %1682 = vmatpush2.bf16.msra.mxu0 0
        %1683 = vmatprep.subr.bf16.mxu0 0
        %1684 = vmatpush2.bf16.msra.mxu0 0
        %1685 = vmatprep.subr.bf16.mxu0 0
        %1686 = vmatpush2.bf16.msra.mxu0 0
        %1687 = vmatprep.subr.bf16.mxu0 0
        %1688 = vmatpush2.bf16.msra.mxu0 0
        %1689 = vmatprep.mubr.bf16.mxu0 0
        %1690 = vmatmul.mubr.bf16.gmra.mxu0 %v1652
        %v1691 = vpop.f32.mrf.mxu0
        %v1692 = vadd.f32 %v1625, %v1691
        %v1693 = vpop.f32.mrf.mxu0
        %v1694 = vpop.f32.mrf.mxu0
        %v1695 = vadd.f32 %v1628, %v1694
        %v1696 = vpop.f32.mrf.mxu0
        %1697 = vmatprep.mubr.bf16.mxu0 0
        %1698 = vmatmul.mubr.bf16.gmra.mxu0 %v1655
        %v1699 = vpop.f32.mrf.mxu0
        %v1700 = vadd.f32 %v1633, %v1699
        %v1701 = vpop.f32.mrf.mxu0
        %v1702 = vpop.f32.mrf.mxu0
        %v1703 = vadd.f32 %v1636, %v1702
        %v1704 = vpop.f32.mrf.mxu0
        %1705 = vdwg.mxu0
        %s1706 = scalar_lea.vmem [#allocation3], 16
        %v1707 = vld [vmem:[%s1706] sm:$0xff]
        %v1708 = vld [vmem:[%s1706 + $0x8] sm:$0xff]
        %v1709 = vld [vmem:[%s1706 + $0x10] sm:$0xff]
        %v1710 = vld [vmem:[%s1706 + $0x18] sm:$0xff]
        %v1711 = vpack.c.bf16 %v1708, %v1707
        %v1712 = vpack.c.bf16 %v1710, %v1709
        %s1713 = scalar_lea.vmem %s5, 32
        %v1714 = vld [vmem:[%s1713] sm:$0xf]
        %v1715 = vld [vmem:[%s1713 + $0x4] sm:$0xf]
        %v1716 = vld [vmem:[%s1713 + $0x8] sm:$0xf]
        %v1717 = vld [vmem:[%s1713 + $0xc] sm:$0xf]
        %v1722 = vunpack.c.l.b16 %v1714
        %v1723 = vunpack.c.l.b16 %v1715
        %v1724 = vunpack.c.l.b16 %v1716
        %v1725 = vunpack.c.l.b16 %v1717
        %v1726 = vpack.c.b16 %v1723, %v1722
        %v1727 = vpack.c.b16 %v1725, %v1724
        %v1731 = vsel %vm1530, %v1711, 0
        %v1734 = vsel %vm1530, %v1712, 0
        %1736 = vmatprep.subr.bf16.mxu0 0
        %1737 = vmatpush1.bf16.msra.mxu0 0
        %1738 = vmatprep.subr.bf16.mxu0 0
        %1739 = vmatpush1.bf16.msra.mxu0 0
        %1740 = vmatprep.subr.bf16.mxu0 0
        %1741 = vmatpush1.bf16.msra.mxu0 0
        %1742 = vmatprep.subr.bf16.mxu0 0
        %1743 = vmatpush1.bf16.msra.mxu0 0
        %1744 = vmatprep.subr.bf16.mxu0 0
        %1745 = vmatpush1.bf16.msra.mxu0 0
        %1746 = vmatprep.subr.bf16.mxu0 0
        %1747 = vmatpush1.bf16.msra.mxu0 0
        %1748 = vmatprep.subr.bf16.mxu0 0
        %1749 = vmatpush1.bf16.msra.mxu0 %v1727
        %1750 = vmatprep.subr.bf16.mxu0 0
        %1751 = vmatpush1.bf16.msra.mxu0 %v1726
        %1752 = vmatprep.subr.bf16.mxu0 0
        %1753 = vmatpush2.bf16.msra.mxu0 0
        %1754 = vmatprep.subr.bf16.mxu0 0
        %1755 = vmatpush2.bf16.msra.mxu0 0
        %1756 = vmatprep.subr.bf16.mxu0 0
        %1757 = vmatpush2.bf16.msra.mxu0 0
        %1758 = vmatprep.subr.bf16.mxu0 0
        %1759 = vmatpush2.bf16.msra.mxu0 0
        %1760 = vmatprep.subr.bf16.mxu0 0
        %1761 = vmatpush2.bf16.msra.mxu0 0
        %1762 = vmatprep.subr.bf16.mxu0 0
        %1763 = vmatpush2.bf16.msra.mxu0 0
        %1764 = vmatprep.subr.bf16.mxu0 0
        %1765 = vmatpush2.bf16.msra.mxu0 0
        %1766 = vmatprep.subr.bf16.mxu0 0
        %1767 = vmatpush2.bf16.msra.mxu0 0
        %1768 = vmatprep.mubr.bf16.mxu0 0
        %1769 = vmatmul.mubr.bf16.gmra.mxu0 %v1731
        %v1770 = vpop.f32.mrf.mxu0
        %v1771 = vadd.f32 0.0, %v1770
        %v1772 = vpop.f32.mrf.mxu0
        %v1773 = vpop.f32.mrf.mxu0
        %v1774 = vadd.f32 0.0, %v1773
        %v1775 = vpop.f32.mrf.mxu0
        %1776 = vmatprep.mubr.bf16.mxu0 0
        %1777 = vmatmul.mubr.bf16.gmra.mxu0 %v1734
        %v1778 = vpop.f32.mrf.mxu0
        %v1779 = vadd.f32 0.0, %v1778
        %v1780 = vpop.f32.mrf.mxu0
        %v1781 = vpop.f32.mrf.mxu0
        %v1782 = vadd.f32 0.0, %v1781
        %v1783 = vpop.f32.mrf.mxu0
        %1784 = vdwg.mxu0
        %v1785 = vadd.f32 %v1692, %v1771
        %v1786 = vadd.f32 %v1695, %v1774
        %v1787 = vadd.f32 %v1700, %v1779
        %v1788 = vadd.f32 %v1703, %v1782
        %v1789 = vld [vmem:[%s6] sm:$0x1]
        %v1791 = vlaneseq
        %v1792 = vshrl.u32 %v1791, 7
        %v1793 = vsub.s32 0, %v1792
        %v1794 = vrot.slane %v1789, %v1793
        %v1796 = vadd.f32 %v1785, %v1794
        %v1797 = vadd.f32 %v1786, %v1794
        %v1798 = vadd.f32 %v1787, %v1794
        %v1799 = vadd.f32 %v1788, %v1794
        %v1800 = vmax.f32 %v1796, 0.0
        %v1801 = vmax.f32 %v1797, 0.0
        %v1802 = vmax.f32 %v1798, 0.0
        %v1803 = vmax.f32 %v1799, 0.0
        %1808 = vrot.lane.b32.xlu0 %v1800, 96
        %v1809 = vpop.permute.xlu0 %1808
        %1810 = vrot.lane.b32.xlu0 %v1801, 96
        %v1811 = vpop.permute.xlu0 %1810
        %1812 = vrot.lane.b32.xlu0 %v1802, 96
        %v1813 = vpop.permute.xlu0 %1812
        %1814 = vrot.lane.b32.xlu0 %v1803, 96
        %v1815 = vpop.permute.xlu0 %1814
        %v1820 = vmax.f32 %v1800, %v1809
        %v1821 = vmax.f32 %v1801, %v1811
        %v1822 = vmax.f32 %v1802, %v1813
        %v1823 = vmax.f32 %v1803, %v1815
        %v1824 = vsel %vm1530, %v1820, -inf
        %v1825 = vsel %vm1530, %v1821, -inf
        %v1826 = vmax.f32 %v1824, %v1825
        %v1827 = vsel %vm1530, %v1822, -inf
        %v1828 = vsel %vm1530, %v1823, -inf
        %v1829 = vmax.f32 %v1827, %v1828
        %1831 = vrot.lane.b32.xlu0 %v1829, 32
        %v1832 = vpop.permute.xlu0 %1831
        %v1834 = vsel %vm1530, %v1826, %v1832
        %v1835 = vpack.c.bf16 %v1834, %v1834
        %v1836 = vld [vmem:[%s7] sm:$0xff]
        %v1837 = vld [vmem:[%s7 + $0x8] sm:$0xff]
        %v1838 = vld [vmem:[%s7 + $0x10] sm:$0xff]
        %v1839 = vld [vmem:[%s7 + $0x18] sm:$0xff]
        %v1840 = vld [vmem:[%s7 + $0x20] sm:$0xff]
        %v1841 = vld [vmem:[%s7 + $0x28] sm:$0xff]
        %v1842 = vld [vmem:[%s7 + $0x30] sm:$0xff]
        %v1843 = vld [vmem:[%s7 + $0x38] sm:$0xff]
        %v1844 = vld [vmem:[%s7 + $0x40] sm:$0xff]
        %v1845 = vld [vmem:[%s7 + $0x48] sm:$0xff]
        %v1846 = vld [vmem:[%s7 + $0x50] sm:$0xff]
        %v1847 = vld [vmem:[%s7 + $0x58] sm:$0xff]
        %v1848 = vld [vmem:[%s7 + $0x60] sm:$0xff]
        %v1849 = vld [vmem:[%s7 + $0x68] sm:$0xff]
        %v1850 = vld [vmem:[%s7 + $0x70] sm:$0xff]
        %v1851 = vld [vmem:[%s7 + $0x78] sm:$0xff]
        %v1852 = vld [vmem:[%s7 + $0x80] sm:$0xff]
        %v1853 = vld [vmem:[%s7 + $0x88] sm:$0xff]
        %v1854 = vld [vmem:[%s7 + $0x90] sm:$0xff]
        %v1855 = vld [vmem:[%s7 + $0x98] sm:$0xff]
        %v1856 = vld [vmem:[%s7 + $0xa0] sm:$0xff]
        %v1857 = vld [vmem:[%s7 + $0xa8] sm:$0xff]
        %v1858 = vld [vmem:[%s7 + $0xb0] sm:$0xff]
        %v1859 = vld [vmem:[%s7 + $0xb8] sm:$0xff]
        %v1860 = vld [vmem:[%s7 + $0xc0] sm:$0xff]
        %v1861 = vld [vmem:[%s7 + $0xc8] sm:$0xff]
        %v1862 = vld [vmem:[%s7 + $0xd0] sm:$0xff]
        %v1863 = vld [vmem:[%s7 + $0xd8] sm:$0xff]
        %v1864 = vld [vmem:[%s7 + $0xe0] sm:$0xff]
        %v1865 = vld [vmem:[%s7 + $0xe8] sm:$0xff]
        %v1866 = vld [vmem:[%s7 + $0xf0] sm:$0xff]
        %v1867 = vld [vmem:[%s7 + $0xf8] sm:$0xff]
        %v1868 = vld [vmem:[%s8] sm:$0xff]
        %v1870 = vlaneseq
        %v1871 = vshrl.u32 %v1870, 7
        %v1872 = vsub.s32 0, %v1871
        %v1873 = vrot.slane %v1868, %v1872
        %v1874 = vlaneseq
        %v1875 = vshrl.u32 %v1874, 7
        %v1876 = vsub.s32 1, %v1875
        %v1877 = vrot.slane %v1868, %v1876
        %v1878 = vlaneseq
        %v1879 = vshrl.u32 %v1878, 7
        %v1880 = vsub.s32 2, %v1879
        %v1881 = vrot.slane %v1868, %v1880
        %v1882 = vlaneseq
        %v1883 = vshrl.u32 %v1882, 7
        %v1884 = vsub.s32 3, %v1883
        %v1885 = vrot.slane %v1868, %v1884
        %v1886 = vlaneseq
        %v1887 = vshrl.u32 %v1886, 7
        %v1888 = vsub.s32 4, %v1887
        %v1889 = vrot.slane %v1868, %v1888
        %v1890 = vlaneseq
        %v1891 = vshrl.u32 %v1890, 7
        %v1892 = vsub.s32 5, %v1891
        %v1893 = vrot.slane %v1868, %v1892
        %v1894 = vlaneseq
        %v1895 = vshrl.u32 %v1894, 7
        %v1896 = vsub.s32 6, %v1895
        %v1897 = vrot.slane %v1868, %v1896
        %v1898 = vlaneseq
        %v1899 = vshrl.u32 %v1898, 7
        %v1900 = vsub.s32 7, %v1899
        %v1901 = vrot.slane %v1868, %v1900
        %v1942 = vunpack.c.l.b16 %v1836
        %v1943 = vunpack.c.h.b16 %v1836
        %v1944 = vunpack.c.l.b16 %v1837
        %v1945 = vunpack.c.h.b16 %v1837
        %v1946 = vunpack.c.l.b16 %v1838
        %v1947 = vunpack.c.h.b16 %v1838
        %v1948 = vunpack.c.l.b16 %v1839
        %v1949 = vunpack.c.h.b16 %v1839
        %v1950 = vunpack.c.l.b16 %v1840
        %v1951 = vunpack.c.h.b16 %v1840
        %v1952 = vunpack.c.l.b16 %v1841
        %v1953 = vunpack.c.h.b16 %v1841
        %v1954 = vunpack.c.l.b16 %v1842
        %v1955 = vunpack.c.h.b16 %v1842
        %v1956 = vunpack.c.l.b16 %v1843
        %v1957 = vunpack.c.h.b16 %v1843
        %v1958 = vunpack.c.l.b16 %v1844
        %v1959 = vunpack.c.h.b16 %v1844
        %v1960 = vunpack.c.l.b16 %v1845
        %v1961 = vunpack.c.h.b16 %v1845
        %v1962 = vunpack.c.l.b16 %v1846
        %v1963 = vunpack.c.h.b16 %v1846
        %v1964 = vunpack.c.l.b16 %v1847
        %v1965 = vunpack.c.h.b16 %v1847
        %v1966 = vunpack.c.l.b16 %v1848
        %v1967 = vunpack.c.h.b16 %v1848
        %v1968 = vunpack.c.l.b16 %v1849
        %v1969 = vunpack.c.h.b16 %v1849
        %v1970 = vunpack.c.l.b16 %v1850
        %v1971 = vunpack.c.h.b16 %v1850
        %v1972 = vunpack.c.l.b16 %v1851
        %v1973 = vunpack.c.h.b16 %v1851
        %v1974 = vunpack.c.l.b16 %v1852
        %v1975 = vunpack.c.h.b16 %v1852
        %v1976 = vunpack.c.l.b16 %v1853
        %v1977 = vunpack.c.h.b16 %v1853
        %v1978 = vunpack.c.l.b16 %v1854
        %v1979 = vunpack.c.h.b16 %v1854
        %v1980 = vunpack.c.l.b16 %v1855
        %v1981 = vunpack.c.h.b16 %v1855
        %v1982 = vunpack.c.l.b16 %v1856
        %v1983 = vunpack.c.h.b16 %v1856
        %v1984 = vunpack.c.l.b16 %v1857
        %v1985 = vunpack.c.h.b16 %v1857
        %v1986 = vunpack.c.l.b16 %v1858
        %v1987 = vunpack.c.h.b16 %v1858
        %v1988 = vunpack.c.l.b16 %v1859
        %v1989 = vunpack.c.h.b16 %v1859
        %v1990 = vunpack.c.l.b16 %v1860
        %v1991 = vunpack.c.h.b16 %v1860
        %v1992 = vunpack.c.l.b16 %v1861
        %v1993 = vunpack.c.h.b16 %v1861
        %v1994 = vunpack.c.l.b16 %v1862
        %v1995 = vunpack.c.h.b16 %v1862
        %v1996 = vunpack.c.l.b16 %v1863
        %v1997 = vunpack.c.h.b16 %v1863
        %v1998 = vunpack.c.l.b16 %v1864
        %v1999 = vunpack.c.h.b16 %v1864
        %v2000 = vunpack.c.l.b16 %v1865
        %v2001 = vunpack.c.h.b16 %v1865
        %v2002 = vunpack.c.l.b16 %v1866
        %v2003 = vunpack.c.h.b16 %v1866
        %v2004 = vunpack.c.l.b16 %v1867
        %v2005 = vunpack.c.h.b16 %v1867
        %v2006 = vpack.c.b16 %v1950, %v1942
        %v2007 = vpack.c.b16 %v1951, %v1943
        %v2008 = vpack.c.b16 %v1952, %v1944
        %v2009 = vpack.c.b16 %v1953, %v1945
        %v2010 = vpack.c.b16 %v1954, %v1946
        %v2011 = vpack.c.b16 %v1955, %v1947
        %v2012 = vpack.c.b16 %v1956, %v1948
        %v2013 = vpack.c.b16 %v1957, %v1949
        %v2014 = vpack.c.b16 %v1966, %v1958
        %v2015 = vpack.c.b16 %v1967, %v1959
        %v2016 = vpack.c.b16 %v1968, %v1960
        %v2017 = vpack.c.b16 %v1969, %v1961
        %v2018 = vpack.c.b16 %v1970, %v1962
        %v2019 = vpack.c.b16 %v1971, %v1963
        %v2020 = vpack.c.b16 %v1972, %v1964
        %v2021 = vpack.c.b16 %v1973, %v1965
        %v2022 = vpack.c.b16 %v1982, %v1974
        %v2023 = vpack.c.b16 %v1983, %v1975
        %v2024 = vpack.c.b16 %v1984, %v1976
        %v2025 = vpack.c.b16 %v1985, %v1977
        %v2026 = vpack.c.b16 %v1986, %v1978
        %v2027 = vpack.c.b16 %v1987, %v1979
        %v2028 = vpack.c.b16 %v1988, %v1980
        %v2029 = vpack.c.b16 %v1989, %v1981
        %v2030 = vpack.c.b16 %v1998, %v1990
        %v2031 = vpack.c.b16 %v1999, %v1991
        %v2032 = vpack.c.b16 %v2000, %v1992
        %v2033 = vpack.c.b16 %v2001, %v1993
        %v2034 = vpack.c.b16 %v2002, %v1994
        %v2035 = vpack.c.b16 %v2003, %v1995
        %v2036 = vpack.c.b16 %v2004, %v1996
        %v2037 = vpack.c.b16 %v2005, %v1997
        %v2071 = vsel %vm476, %v1835, 0
        %2073 = vmatprep.subr.bf16.mxu0 0
        %2074 = vmatpush1.bf16.msra.mxu0 0
        %2075 = vmatprep.subr.bf16.mxu0 0
        %2076 = vmatpush1.bf16.msra.mxu0 0
        %2077 = vmatprep.subr.bf16.mxu0 0
        %2078 = vmatpush1.bf16.msra.mxu0 0
        %2079 = vmatprep.subr.bf16.mxu0 0
        %2080 = vmatpush1.bf16.msra.mxu0 0
        %2081 = vmatprep.subr.bf16.mxu0 %v2031
        %2082 = vmatpush1.bf16.msra.mxu0 %v2030
        %2083 = vmatprep.subr.bf16.mxu0 %v2023
        %2084 = vmatpush1.bf16.msra.mxu0 %v2022
        %2085 = vmatprep.subr.bf16.mxu0 %v2015
        %2086 = vmatpush1.bf16.msra.mxu0 %v2014
        %2087 = vmatprep.subr.bf16.mxu0 %v2007
        %2088 = vmatpush1.bf16.msra.mxu0 %v2006
        %2089 = vmatprep.subr.bf16.mxu0 0
        %2090 = vmatpush2.bf16.msra.mxu0 0
        %2091 = vmatprep.subr.bf16.mxu0 0
        %2092 = vmatpush2.bf16.msra.mxu0 0
        %2093 = vmatprep.subr.bf16.mxu0 0
        %2094 = vmatpush2.bf16.msra.mxu0 0
        %2095 = vmatprep.subr.bf16.mxu0 0
        %2096 = vmatpush2.bf16.msra.mxu0 0
        %2097 = vmatprep.subr.bf16.mxu0 0
        %2098 = vmatpush2.bf16.msra.mxu0 0
        %2099 = vmatprep.subr.bf16.mxu0 0
        %2100 = vmatpush2.bf16.msra.mxu0 0
        %2101 = vmatprep.subr.bf16.mxu0 0
        %2102 = vmatpush2.bf16.msra.mxu0 0
        %2103 = vmatprep.subr.bf16.mxu0 0
        %2104 = vmatpush2.bf16.msra.mxu0 0
        %2105 = vmatprep.mubr.bf16.mxu0 0
        %2106 = vmatmul.mubr.bf16.gmra.mxu0 %v2071
        %v2107 = vpop.f32.mrf.mxu0
        %v2108 = vadd.f32 %v1873, %v2107
        %v2109 = vpop.f32.mrf.mxu0
        %v2110 = vadd.f32 %v1877, %v2109
        %v2111 = vpop.f32.mrf.mxu0
        %v2112 = vpop.f32.mrf.mxu0
        %2113 = vdwg.mxu0
        %2114 = vmatprep.subr.bf16.mxu0 0
        %2115 = vmatpush1.bf16.msra.mxu0 0
        %2116 = vmatprep.subr.bf16.mxu0 0
        %2117 = vmatpush1.bf16.msra.mxu0 0
        %2118 = vmatprep.subr.bf16.mxu0 0
        %2119 = vmatpush1.bf16.msra.mxu0 0
        %2120 = vmatprep.subr.bf16.mxu0 0
        %2121 = vmatpush1.bf16.msra.mxu0 0
        %2122 = vmatprep.subr.bf16.mxu0 %v2033
        %2123 = vmatpush1.bf16.msra.mxu0 %v2032
        %2124 = vmatprep.subr.bf16.mxu0 %v2025
        %2125 = vmatpush1.bf16.msra.mxu0 %v2024
        %2126 = vmatprep.subr.bf16.mxu0 %v2017
        %2127 = vmatpush1.bf16.msra.mxu0 %v2016
        %2128 = vmatprep.subr.bf16.mxu0 %v2009
        %2129 = vmatpush1.bf16.msra.mxu0 %v2008
        %2130 = vmatprep.subr.bf16.mxu0 0
        %2131 = vmatpush2.bf16.msra.mxu0 0
        %2132 = vmatprep.subr.bf16.mxu0 0
        %2133 = vmatpush2.bf16.msra.mxu0 0
        %2134 = vmatprep.subr.bf16.mxu0 0
        %2135 = vmatpush2.bf16.msra.mxu0 0
        %2136 = vmatprep.subr.bf16.mxu0 0
        %2137 = vmatpush2.bf16.msra.mxu0 0
        %2138 = vmatprep.subr.bf16.mxu0 0
        %2139 = vmatpush2.bf16.msra.mxu0 0
        %2140 = vmatprep.subr.bf16.mxu0 0
        %2141 = vmatpush2.bf16.msra.mxu0 0
        %2142 = vmatprep.subr.bf16.mxu0 0
        %2143 = vmatpush2.bf16.msra.mxu0 0
        %2144 = vmatprep.subr.bf16.mxu0 0
        %2145 = vmatpush2.bf16.msra.mxu0 0
        %2146 = vmatprep.mubr.bf16.mxu0 0
        %2147 = vmatmul.mubr.bf16.gmra.mxu0 %v2071
        %v2148 = vpop.f32.mrf.mxu0
        %v2149 = vadd.f32 %v1881, %v2148
        %v2150 = vpop.f32.mrf.mxu0
        %v2151 = vadd.f32 %v1885, %v2150
        %v2152 = vpop.f32.mrf.mxu0
        %v2153 = vpop.f32.mrf.mxu0
        %2154 = vdwg.mxu0
        %2155 = vmatprep.subr.bf16.mxu0 0
        %2156 = vmatpush1.bf16.msra.mxu0 0
        %2157 = vmatprep.subr.bf16.mxu0 0
        %2158 = vmatpush1.bf16.msra.mxu0 0
        %2159 = vmatprep.subr.bf16.mxu0 0
        %2160 = vmatpush1.bf16.msra.mxu0 0
        %2161 = vmatprep.subr.bf16.mxu0 0
        %2162 = vmatpush1.bf16.msra.mxu0 0
        %2163 = vmatprep.subr.bf16.mxu0 %v2035
        %2164 = vmatpush1.bf16.msra.mxu0 %v2034
        %2165 = vmatprep.subr.bf16.mxu0 %v2027
        %2166 = vmatpush1.bf16.msra.mxu0 %v2026
        %2167 = vmatprep.subr.bf16.mxu0 %v2019
        %2168 = vmatpush1.bf16.msra.mxu0 %v2018
        %2169 = vmatprep.subr.bf16.mxu0 %v2011
        %2170 = vmatpush1.bf16.msra.mxu0 %v2010
        %2171 = vmatprep.subr.bf16.mxu0 0
        %2172 = vmatpush2.bf16.msra.mxu0 0
        %2173 = vmatprep.subr.bf16.mxu0 0
        %2174 = vmatpush2.bf16.msra.mxu0 0
        %2175 = vmatprep.subr.bf16.mxu0 0
        %2176 = vmatpush2.bf16.msra.mxu0 0
        %2177 = vmatprep.subr.bf16.mxu0 0
        %2178 = vmatpush2.bf16.msra.mxu0 0
        %2179 = vmatprep.subr.bf16.mxu0 0
        %2180 = vmatpush2.bf16.msra.mxu0 0
        %2181 = vmatprep.subr.bf16.mxu0 0
        %2182 = vmatpush2.bf16.msra.mxu0 0
        %2183 = vmatprep.subr.bf16.mxu0 0
        %2184 = vmatpush2.bf16.msra.mxu0 0
        %2185 = vmatprep.subr.bf16.mxu0 0
        %2186 = vmatpush2.bf16.msra.mxu0 0
        %2187 = vmatprep.mubr.bf16.mxu0 0
        %2188 = vmatmul.mubr.bf16.gmra.mxu0 %v2071
        %v2189 = vpop.f32.mrf.mxu0
        %v2190 = vadd.f32 %v1889, %v2189
        %v2191 = vpop.f32.mrf.mxu0
        %v2192 = vadd.f32 %v1893, %v2191
        %v2193 = vpop.f32.mrf.mxu0
        %v2194 = vpop.f32.mrf.mxu0
        %2195 = vdwg.mxu0
        %2196 = vmatprep.subr.bf16.mxu0 0
        %2197 = vmatpush1.bf16.msra.mxu0 0
        %2198 = vmatprep.subr.bf16.mxu0 0
        %2199 = vmatpush1.bf16.msra.mxu0 0
        %2200 = vmatprep.subr.bf16.mxu0 0
        %2201 = vmatpush1.bf16.msra.mxu0 0
        %2202 = vmatprep.subr.bf16.mxu0 0
        %2203 = vmatpush1.bf16.msra.mxu0 0
        %2204 = vmatprep.subr.bf16.mxu0 %v2037
        %2205 = vmatpush1.bf16.msra.mxu0 %v2036
        %2206 = vmatprep.subr.bf16.mxu0 %v2029
        %2207 = vmatpush1.bf16.msra.mxu0 %v2028
        %2208 = vmatprep.subr.bf16.mxu0 %v2021
        %2209 = vmatpush1.bf16.msra.mxu0 %v2020
        %2210 = vmatprep.subr.bf16.mxu0 %v2013
        %2211 = vmatpush1.bf16.msra.mxu0 %v2012
        %2212 = vmatprep.subr.bf16.mxu0 0
        %2213 = vmatpush2.bf16.msra.mxu0 0
        %2214 = vmatprep.subr.bf16.mxu0 0
        %2215 = vmatpush2.bf16.msra.mxu0 0
        %2216 = vmatprep.subr.bf16.mxu0 0
        %2217 = vmatpush2.bf16.msra.mxu0 0
        %2218 = vmatprep.subr.bf16.mxu0 0
        %2219 = vmatpush2.bf16.msra.mxu0 0
        %2220 = vmatprep.subr.bf16.mxu0 0
        %2221 = vmatpush2.bf16.msra.mxu0 0
        %2222 = vmatprep.subr.bf16.mxu0 0
        %2223 = vmatpush2.bf16.msra.mxu0 0
        %2224 = vmatprep.subr.bf16.mxu0 0
        %2225 = vmatpush2.bf16.msra.mxu0 0
        %2226 = vmatprep.subr.bf16.mxu0 0
        %2227 = vmatpush2.bf16.msra.mxu0 0
        %2228 = vmatprep.mubr.bf16.mxu0 0
        %2229 = vmatmul.mubr.bf16.gmra.mxu0 %v2071
        %v2230 = vpop.f32.mrf.mxu0
        %v2231 = vadd.f32 %v1897, %v2230
        %v2232 = vpop.f32.mrf.mxu0
        %v2233 = vadd.f32 %v1901, %v2232
        %v2234 = vpop.f32.mrf.mxu0
        %v2235 = vpop.f32.mrf.mxu0
        %2236 = vdwg.mxu0
        %v2237 = vmax.f32 %v2108, 0.0
        %v2238 = vmax.f32 %v2110, 0.0
        %v2239 = vmax.f32 %v2149, 0.0
        %v2240 = vmax.f32 %v2151, 0.0
        %v2241 = vmax.f32 %v2190, 0.0
        %v2242 = vmax.f32 %v2192, 0.0
        %v2243 = vmax.f32 %v2231, 0.0
        %v2244 = vmax.f32 %v2233, 0.0
        %v2245 = vld [vmem:[%s9] sm:$0xff]
        %v2246 = vld [vmem:[%s9 + $0x8] sm:$0xff]
        %v2247 = vld [vmem:[%s9 + $0x10] sm:$0xff]
        %v2248 = vld [vmem:[%s9 + $0x18] sm:$0xff]
        %v2249 = vld [vmem:[%s9 + $0x20] sm:$0xff]
        %v2250 = vld [vmem:[%s9 + $0x28] sm:$0xff]
        %v2251 = vld [vmem:[%s9 + $0x30] sm:$0xff]
        %v2252 = vld [vmem:[%s9 + $0x38] sm:$0xff]
        %v2253 = vld [vmem:[%s9 + $0x40] sm:$0xff]
        %v2254 = vld [vmem:[%s9 + $0x48] sm:$0xff]
        %v2255 = vld [vmem:[%s9 + $0x50] sm:$0xff]
        %v2256 = vld [vmem:[%s9 + $0x58] sm:$0xff]
        %v2257 = vld [vmem:[%s9 + $0x60] sm:$0xff]
        %v2258 = vld [vmem:[%s9 + $0x68] sm:$0xff]
        %v2259 = vld [vmem:[%s9 + $0x70] sm:$0xff]
        %v2260 = vld [vmem:[%s9 + $0x78] sm:$0xff]
        %v2261 = vld [vmem:[%s9 + $0x80] sm:$0xff]
        %v2262 = vld [vmem:[%s9 + $0x88] sm:$0xff]
        %v2263 = vld [vmem:[%s9 + $0x90] sm:$0xff]
        %v2264 = vld [vmem:[%s9 + $0x98] sm:$0xff]
        %v2265 = vld [vmem:[%s9 + $0xa0] sm:$0xff]
        %v2266 = vld [vmem:[%s9 + $0xa8] sm:$0xff]
        %v2267 = vld [vmem:[%s9 + $0xb0] sm:$0xff]
        %v2268 = vld [vmem:[%s9 + $0xb8] sm:$0xff]
        %v2269 = vld [vmem:[%s9 + $0xc0] sm:$0xff]
        %v2270 = vld [vmem:[%s9 + $0xc8] sm:$0xff]
        %v2271 = vld [vmem:[%s9 + $0xd0] sm:$0xff]
        %v2272 = vld [vmem:[%s9 + $0xd8] sm:$0xff]
        %v2273 = vld [vmem:[%s9 + $0xe0] sm:$0xff]
        %v2274 = vld [vmem:[%s9 + $0xe8] sm:$0xff]
        %v2275 = vld [vmem:[%s9 + $0xf0] sm:$0xff]
        %v2276 = vld [vmem:[%s9 + $0xf8] sm:$0xff]
        %v2277 = vld [vmem:[%s9 + $0x100] sm:$0xff]
        %v2278 = vld [vmem:[%s9 + $0x108] sm:$0xff]
        %v2279 = vld [vmem:[%s9 + $0x110] sm:$0xff]
        %v2280 = vld [vmem:[%s9 + $0x118] sm:$0xff]
        %v2281 = vld [vmem:[%s9 + $0x120] sm:$0xff]
        %v2282 = vld [vmem:[%s9 + $0x128] sm:$0xff]
        %v2283 = vld [vmem:[%s9 + $0x130] sm:$0xff]
        %v2284 = vld [vmem:[%s9 + $0x138] sm:$0xff]
        %v2285 = vld [vmem:[%s9 + $0x140] sm:$0xff]
        %v2286 = vld [vmem:[%s9 + $0x148] sm:$0xff]
        %v2287 = vld [vmem:[%s9 + $0x150] sm:$0xff]
        %v2288 = vld [vmem:[%s9 + $0x158] sm:$0xff]
        %v2289 = vld [vmem:[%s9 + $0x160] sm:$0xff]
        %v2290 = vld [vmem:[%s9 + $0x168] sm:$0xff]
        %v2291 = vld [vmem:[%s9 + $0x170] sm:$0xff]
        %v2292 = vld [vmem:[%s9 + $0x178] sm:$0xff]
        %v2293 = vld [vmem:[%s9 + $0x180] sm:$0xff]
        %v2294 = vld [vmem:[%s9 + $0x188] sm:$0xff]
        %v2295 = vld [vmem:[%s9 + $0x190] sm:$0xff]
        %v2296 = vld [vmem:[%s9 + $0x198] sm:$0xff]
        %v2297 = vld [vmem:[%s9 + $0x1a0] sm:$0xff]
        %v2298 = vld [vmem:[%s9 + $0x1a8] sm:$0xff]
        %v2299 = vld [vmem:[%s9 + $0x1b0] sm:$0xff]
        %v2300 = vld [vmem:[%s9 + $0x1b8] sm:$0xff]
        %v2301 = vld [vmem:[%s9 + $0x1c0] sm:$0xff]
        %v2302 = vld [vmem:[%s9 + $0x1c8] sm:$0xff]
        %v2303 = vld [vmem:[%s9 + $0x1d0] sm:$0xff]
        %v2304 = vld [vmem:[%s9 + $0x1d8] sm:$0xff]
        %v2305 = vld [vmem:[%s9 + $0x1e0] sm:$0xff]
        %v2306 = vld [vmem:[%s9 + $0x1e8] sm:$0xff]
        %v2307 = vld [vmem:[%s9 + $0x1f0] sm:$0xff]
        %v2308 = vld [vmem:[%s9 + $0x1f8] sm:$0xff]
        %v2309 = vld [vmem:[%s9 + $0x200] sm:$0xff]
        %v2310 = vld [vmem:[%s9 + $0x208] sm:$0xff]
        %v2311 = vld [vmem:[%s9 + $0x210] sm:$0xff]
        %v2312 = vld [vmem:[%s9 + $0x218] sm:$0xff]
        %v2313 = vld [vmem:[%s9 + $0x220] sm:$0xff]
        %v2314 = vld [vmem:[%s9 + $0x228] sm:$0xff]
        %v2315 = vld [vmem:[%s9 + $0x230] sm:$0xff]
        %v2316 = vld [vmem:[%s9 + $0x238] sm:$0xff]
        %v2317 = vld [vmem:[%s9 + $0x240] sm:$0xff]
        %v2318 = vld [vmem:[%s9 + $0x248] sm:$0xff]
        %v2319 = vld [vmem:[%s9 + $0x250] sm:$0xff]
        %v2320 = vld [vmem:[%s9 + $0x258] sm:$0xff]
        %v2321 = vld [vmem:[%s9 + $0x260] sm:$0xff]
        %v2322 = vld [vmem:[%s9 + $0x268] sm:$0xff]
        %v2323 = vld [vmem:[%s9 + $0x270] sm:$0xff]
        %v2324 = vld [vmem:[%s9 + $0x278] sm:$0xff]
        %v2325 = vld [vmem:[%s9 + $0x280] sm:$0xff]
        %v2326 = vld [vmem:[%s9 + $0x288] sm:$0xff]
        %v2327 = vld [vmem:[%s9 + $0x290] sm:$0xff]
        %v2328 = vld [vmem:[%s9 + $0x298] sm:$0xff]
        %v2329 = vld [vmem:[%s9 + $0x2a0] sm:$0xff]
        %v2330 = vld [vmem:[%s9 + $0x2a8] sm:$0xff]
        %v2331 = vld [vmem:[%s9 + $0x2b0] sm:$0xff]
        %v2332 = vld [vmem:[%s9 + $0x2b8] sm:$0xff]
        %v2333 = vld [vmem:[%s9 + $0x2c0] sm:$0xff]
        %v2334 = vld [vmem:[%s9 + $0x2c8] sm:$0xff]
        %v2335 = vld [vmem:[%s9 + $0x2d0] sm:$0xff]
        %v2336 = vld [vmem:[%s9 + $0x2d8] sm:$0xff]
        %v2337 = vld [vmem:[%s9 + $0x2e0] sm:$0xff]
        %v2338 = vld [vmem:[%s9 + $0x2e8] sm:$0xff]
        %v2339 = vld [vmem:[%s9 + $0x2f0] sm:$0xff]
        %v2340 = vld [vmem:[%s9 + $0x2f8] sm:$0xff]
        %v2341 = vld [vmem:[%s9 + $0x300] sm:$0xff]
        %v2342 = vld [vmem:[%s9 + $0x308] sm:$0xff]
        %v2343 = vld [vmem:[%s9 + $0x310] sm:$0xff]
        %v2344 = vld [vmem:[%s9 + $0x318] sm:$0xff]
        %v2345 = vld [vmem:[%s9 + $0x320] sm:$0xff]
        %v2346 = vld [vmem:[%s9 + $0x328] sm:$0xff]
        %v2347 = vld [vmem:[%s9 + $0x330] sm:$0xff]
        %v2348 = vld [vmem:[%s9 + $0x338] sm:$0xff]
        %v2349 = vld [vmem:[%s9 + $0x340] sm:$0xff]
        %v2350 = vld [vmem:[%s9 + $0x348] sm:$0xff]
        %v2351 = vld [vmem:[%s9 + $0x350] sm:$0xff]
        %v2352 = vld [vmem:[%s9 + $0x358] sm:$0xff]
        %v2353 = vld [vmem:[%s9 + $0x360] sm:$0xff]
        %v2354 = vld [vmem:[%s9 + $0x368] sm:$0xff]
        %v2355 = vld [vmem:[%s9 + $0x370] sm:$0xff]
        %v2356 = vld [vmem:[%s9 + $0x378] sm:$0xff]
        %v2357 = vld [vmem:[%s9 + $0x380] sm:$0xff]
        %v2358 = vld [vmem:[%s9 + $0x388] sm:$0xff]
        %v2359 = vld [vmem:[%s9 + $0x390] sm:$0xff]
        %v2360 = vld [vmem:[%s9 + $0x398] sm:$0xff]
        %v2361 = vld [vmem:[%s9 + $0x3a0] sm:$0xff]
        %v2362 = vld [vmem:[%s9 + $0x3a8] sm:$0xff]
        %v2363 = vld [vmem:[%s9 + $0x3b0] sm:$0xff]
        %v2364 = vld [vmem:[%s9 + $0x3b8] sm:$0xff]
        %v2365 = vld [vmem:[%s9 + $0x3c0] sm:$0xff]
        %v2366 = vld [vmem:[%s9 + $0x3c8] sm:$0xff]
        %v2367 = vld [vmem:[%s9 + $0x3d0] sm:$0xff]
        %v2368 = vld [vmem:[%s9 + $0x3d8] sm:$0xff]
        %v2369 = vld [vmem:[%s9 + $0x3e0] sm:$0xff]
        %v2370 = vld [vmem:[%s9 + $0x3e8] sm:$0xff]
        %v2371 = vld [vmem:[%s9 + $0x3f0] sm:$0xff]
        %v2372 = vld [vmem:[%s9 + $0x3f8] sm:$0xff]
        %v2373 = vld [vmem:[%s10] sm:$0x1]
        %v2375 = vlaneseq
        %v2376 = vshrl.u32 %v2375, 7
        %v2377 = vsub.s32 0, %v2376
        %v2378 = vrot.slane %v2373, %v2377
        %2380 = vmatprep.subr.mxu0 0.0
        %2381 = vmatpush1.msra.mxu0 %v2260
        %2382 = vmatprep.subr.mxu0 0.0
        %2383 = vmatpush1.msra.mxu0 %v2259
        %2384 = vmatprep.subr.mxu0 0.0
        %2385 = vmatpush1.msra.mxu0 %v2258
        %2386 = vmatprep.subr.mxu0 0.0
        %2387 = vmatpush1.msra.mxu0 %v2257
        %2388 = vmatprep.subr.mxu0 0.0
        %2389 = vmatpush1.msra.mxu0 %v2256
        %2390 = vmatprep.subr.mxu0 0.0
        %2391 = vmatpush1.msra.mxu0 %v2255
        %2392 = vmatprep.subr.mxu0 0.0
        %2393 = vmatpush1.msra.mxu0 %v2254
        %2394 = vmatprep.subr.mxu0 0.0
        %2395 = vmatpush1.msra.mxu0 %v2253
        %2396 = vmatprep.subr.mxu0 0.0
        %2397 = vmatpush1.msra.mxu0 %v2252
        %2398 = vmatprep.subr.mxu0 0.0
        %2399 = vmatpush1.msra.mxu0 %v2251
        %2400 = vmatprep.subr.mxu0 0.0
        %2401 = vmatpush1.msra.mxu0 %v2250
        %2402 = vmatprep.subr.mxu0 0.0
        %2403 = vmatpush1.msra.mxu0 %v2249
        %2404 = vmatprep.subr.mxu0 0.0
        %2405 = vmatpush1.msra.mxu0 %v2248
        %2406 = vmatprep.subr.mxu0 0.0
        %2407 = vmatpush1.msra.mxu0 %v2247
        %2408 = vmatprep.subr.mxu0 0.0
        %2409 = vmatpush1.msra.mxu0 %v2246
        %2410 = vmatprep.subr.mxu0 0.0
        %2411 = vmatpush1.msra.mxu0 %v2245
        %2412 = vmatprep.subr.mxu0 0.0
        %2413 = vmatpush2.msra.mxu0 %v2276
        %2414 = vmatprep.subr.mxu0 0.0
        %2415 = vmatpush2.msra.mxu0 %v2275
        %2416 = vmatprep.subr.mxu0 0.0
        %2417 = vmatpush2.msra.mxu0 %v2274
        %2418 = vmatprep.subr.mxu0 0.0
        %2419 = vmatpush2.msra.mxu0 %v2273
        %2420 = vmatprep.subr.mxu0 0.0
        %2421 = vmatpush2.msra.mxu0 %v2272
        %2422 = vmatprep.subr.mxu0 0.0
        %2423 = vmatpush2.msra.mxu0 %v2271
        %2424 = vmatprep.subr.mxu0 0.0
        %2425 = vmatpush2.msra.mxu0 %v2270
        %2426 = vmatprep.subr.mxu0 0.0
        %2427 = vmatpush2.msra.mxu0 %v2269
        %2428 = vmatprep.subr.mxu0 0.0
        %2429 = vmatpush2.msra.mxu0 %v2268
        %2430 = vmatprep.subr.mxu0 0.0
        %2431 = vmatpush2.msra.mxu0 %v2267
        %2432 = vmatprep.subr.mxu0 0.0
        %2433 = vmatpush2.msra.mxu0 %v2266
        %2434 = vmatprep.subr.mxu0 0.0
        %2435 = vmatpush2.msra.mxu0 %v2265
        %2436 = vmatprep.subr.mxu0 0.0
        %2437 = vmatpush2.msra.mxu0 %v2264
        %2438 = vmatprep.subr.mxu0 0.0
        %2439 = vmatpush2.msra.mxu0 %v2263
        %2440 = vmatprep.subr.mxu0 0.0
        %2441 = vmatpush2.msra.mxu0 %v2262
        %2442 = vmatprep.subr.mxu0 0.0
        %2443 = vmatpush2.msra.mxu0 %v2261
        %2444 = vmatprep.mubr.f32.mxu0 %v2238
        %2445 = vmatmul.mubr.f32.gmra.mxu0 %v2237
        %v2446 = vpop.f32.mrf.mxu0
        %v2447 = vadd.f32 %v2378, %v2446
        %v2448 = vpop.f32.mrf.mxu0
        %2449 = vdwg.mxu0
        %2450 = vmatprep.subr.mxu0 0.0
        %2451 = vmatpush1.msra.mxu0 %v2292
        %2452 = vmatprep.subr.mxu0 0.0
        %2453 = vmatpush1.msra.mxu0 %v2291
        %2454 = vmatprep.subr.mxu0 0.0
        %2455 = vmatpush1.msra.mxu0 %v2290
        %2456 = vmatprep.subr.mxu0 0.0
        %2457 = vmatpush1.msra.mxu0 %v2289
        %2458 = vmatprep.subr.mxu0 0.0
        %2459 = vmatpush1.msra.mxu0 %v2288
        %2460 = vmatprep.subr.mxu0 0.0
        %2461 = vmatpush1.msra.mxu0 %v2287
        %2462 = vmatprep.subr.mxu0 0.0
        %2463 = vmatpush1.msra.mxu0 %v2286
        %2464 = vmatprep.subr.mxu0 0.0
        %2465 = vmatpush1.msra.mxu0 %v2285
        %2466 = vmatprep.subr.mxu0 0.0
        %2467 = vmatpush1.msra.mxu0 %v2284
        %2468 = vmatprep.subr.mxu0 0.0
        %2469 = vmatpush1.msra.mxu0 %v2283
        %2470 = vmatprep.subr.mxu0 0.0
        %2471 = vmatpush1.msra.mxu0 %v2282
        %2472 = vmatprep.subr.mxu0 0.0
        %2473 = vmatpush1.msra.mxu0 %v2281
        %2474 = vmatprep.subr.mxu0 0.0
        %2475 = vmatpush1.msra.mxu0 %v2280
        %2476 = vmatprep.subr.mxu0 0.0
        %2477 = vmatpush1.msra.mxu0 %v2279
        %2478 = vmatprep.subr.mxu0 0.0
        %2479 = vmatpush1.msra.mxu0 %v2278
        %2480 = vmatprep.subr.mxu0 0.0
        %2481 = vmatpush1.msra.mxu0 %v2277
        %2482 = vmatprep.subr.mxu0 0.0
        %2483 = vmatpush2.msra.mxu0 %v2308
        %2484 = vmatprep.subr.mxu0 0.0
        %2485 = vmatpush2.msra.mxu0 %v2307
        %2486 = vmatprep.subr.mxu0 0.0
        %2487 = vmatpush2.msra.mxu0 %v2306
        %2488 = vmatprep.subr.mxu0 0.0
        %2489 = vmatpush2.msra.mxu0 %v2305
        %2490 = vmatprep.subr.mxu0 0.0
        %2491 = vmatpush2.msra.mxu0 %v2304
        %2492 = vmatprep.subr.mxu0 0.0
        %2493 = vmatpush2.msra.mxu0 %v2303
        %2494 = vmatprep.subr.mxu0 0.0
        %2495 = vmatpush2.msra.mxu0 %v2302
        %2496 = vmatprep.subr.mxu0 0.0
        %2497 = vmatpush2.msra.mxu0 %v2301
        %2498 = vmatprep.subr.mxu0 0.0
        %2499 = vmatpush2.msra.mxu0 %v2300
        %2500 = vmatprep.subr.mxu0 0.0
        %2501 = vmatpush2.msra.mxu0 %v2299
        %2502 = vmatprep.subr.mxu0 0.0
        %2503 = vmatpush2.msra.mxu0 %v2298
        %2504 = vmatprep.subr.mxu0 0.0
        %2505 = vmatpush2.msra.mxu0 %v2297
        %2506 = vmatprep.subr.mxu0 0.0
        %2507 = vmatpush2.msra.mxu0 %v2296
        %2508 = vmatprep.subr.mxu0 0.0
        %2509 = vmatpush2.msra.mxu0 %v2295
        %2510 = vmatprep.subr.mxu0 0.0
        %2511 = vmatpush2.msra.mxu0 %v2294
        %2512 = vmatprep.subr.mxu0 0.0
        %2513 = vmatpush2.msra.mxu0 %v2293
        %2514 = vmatprep.mubr.f32.mxu0 %v2240
        %2515 = vmatmul.mubr.f32.gmra.mxu0 %v2239
        %v2516 = vpop.f32.mrf.mxu0
        %v2517 = vadd.f32 %v2447, %v2516
        %v2518 = vpop.f32.mrf.mxu0
        %2519 = vdwg.mxu0
        %2520 = vmatprep.subr.mxu0 0.0
        %2521 = vmatpush1.msra.mxu0 %v2324
        %2522 = vmatprep.subr.mxu0 0.0
        %2523 = vmatpush1.msra.mxu0 %v2323
        %2524 = vmatprep.subr.mxu0 0.0
        %2525 = vmatpush1.msra.mxu0 %v2322
        %2526 = vmatprep.subr.mxu0 0.0
        %2527 = vmatpush1.msra.mxu0 %v2321
        %2528 = vmatprep.subr.mxu0 0.0
        %2529 = vmatpush1.msra.mxu0 %v2320
        %2530 = vmatprep.subr.mxu0 0.0
        %2531 = vmatpush1.msra.mxu0 %v2319
        %2532 = vmatprep.subr.mxu0 0.0
        %2533 = vmatpush1.msra.mxu0 %v2318
        %2534 = vmatprep.subr.mxu0 0.0
        %2535 = vmatpush1.msra.mxu0 %v2317
        %2536 = vmatprep.subr.mxu0 0.0
        %2537 = vmatpush1.msra.mxu0 %v2316
        %2538 = vmatprep.subr.mxu0 0.0
        %2539 = vmatpush1.msra.mxu0 %v2315
        %2540 = vmatprep.subr.mxu0 0.0
        %2541 = vmatpush1.msra.mxu0 %v2314
        %2542 = vmatprep.subr.mxu0 0.0
        %2543 = vmatpush1.msra.mxu0 %v2313
        %2544 = vmatprep.subr.mxu0 0.0
        %2545 = vmatpush1.msra.mxu0 %v2312
        %2546 = vmatprep.subr.mxu0 0.0
        %2547 = vmatpush1.msra.mxu0 %v2311
        %2548 = vmatprep.subr.mxu0 0.0
        %2549 = vmatpush1.msra.mxu0 %v2310
        %2550 = vmatprep.subr.mxu0 0.0
        %2551 = vmatpush1.msra.mxu0 %v2309
        %2552 = vmatprep.subr.mxu0 0.0
        %2553 = vmatpush2.msra.mxu0 %v2340
        %2554 = vmatprep.subr.mxu0 0.0
        %2555 = vmatpush2.msra.mxu0 %v2339
        %2556 = vmatprep.subr.mxu0 0.0
        %2557 = vmatpush2.msra.mxu0 %v2338
        %2558 = vmatprep.subr.mxu0 0.0
        %2559 = vmatpush2.msra.mxu0 %v2337
        %2560 = vmatprep.subr.mxu0 0.0
        %2561 = vmatpush2.msra.mxu0 %v2336
        %2562 = vmatprep.subr.mxu0 0.0
        %2563 = vmatpush2.msra.mxu0 %v2335
        %2564 = vmatprep.subr.mxu0 0.0
        %2565 = vmatpush2.msra.mxu0 %v2334
        %2566 = vmatprep.subr.mxu0 0.0
        %2567 = vmatpush2.msra.mxu0 %v2333
        %2568 = vmatprep.subr.mxu0 0.0
        %2569 = vmatpush2.msra.mxu0 %v2332
        %2570 = vmatprep.subr.mxu0 0.0
        %2571 = vmatpush2.msra.mxu0 %v2331
        %2572 = vmatprep.subr.mxu0 0.0
        %2573 = vmatpush2.msra.mxu0 %v2330
        %2574 = vmatprep.subr.mxu0 0.0
        %2575 = vmatpush2.msra.mxu0 %v2329
        %2576 = vmatprep.subr.mxu0 0.0
        %2577 = vmatpush2.msra.mxu0 %v2328
        %2578 = vmatprep.subr.mxu0 0.0
        %2579 = vmatpush2.msra.mxu0 %v2327
        %2580 = vmatprep.subr.mxu0 0.0
        %2581 = vmatpush2.msra.mxu0 %v2326
        %2582 = vmatprep.subr.mxu0 0.0
        %2583 = vmatpush2.msra.mxu0 %v2325
        %2584 = vmatprep.mubr.f32.mxu0 %v2242
        %2585 = vmatmul.mubr.f32.gmra.mxu0 %v2241
        %v2586 = vpop.f32.mrf.mxu0
        %v2587 = vadd.f32 %v2517, %v2586
        %v2588 = vpop.f32.mrf.mxu0
        %2589 = vdwg.mxu0
        %2590 = vmatprep.subr.mxu0 0.0
        %2591 = vmatpush1.msra.mxu0 %v2356
        %2592 = vmatprep.subr.mxu0 0.0
        %2593 = vmatpush1.msra.mxu0 %v2355
        %2594 = vmatprep.subr.mxu0 0.0
        %2595 = vmatpush1.msra.mxu0 %v2354
        %2596 = vmatprep.subr.mxu0 0.0
        %2597 = vmatpush1.msra.mxu0 %v2353
        %2598 = vmatprep.subr.mxu0 0.0
        %2599 = vmatpush1.msra.mxu0 %v2352
        %2600 = vmatprep.subr.mxu0 0.0
        %2601 = vmatpush1.msra.mxu0 %v2351
        %2602 = vmatprep.subr.mxu0 0.0
        %2603 = vmatpush1.msra.mxu0 %v2350
        %2604 = vmatprep.subr.mxu0 0.0
        %2605 = vmatpush1.msra.mxu0 %v2349
        %2606 = vmatprep.subr.mxu0 0.0
        %2607 = vmatpush1.msra.mxu0 %v2348
        %2608 = vmatprep.subr.mxu0 0.0
        %2609 = vmatpush1.msra.mxu0 %v2347
        %2610 = vmatprep.subr.mxu0 0.0
        %2611 = vmatpush1.msra.mxu0 %v2346
        %2612 = vmatprep.subr.mxu0 0.0
        %2613 = vmatpush1.msra.mxu0 %v2345
        %2614 = vmatprep.subr.mxu0 0.0
        %2615 = vmatpush1.msra.mxu0 %v2344
        %2616 = vmatprep.subr.mxu0 0.0
        %2617 = vmatpush1.msra.mxu0 %v2343
        %2618 = vmatprep.subr.mxu0 0.0
        %2619 = vmatpush1.msra.mxu0 %v2342
        %2620 = vmatprep.subr.mxu0 0.0
        %2621 = vmatpush1.msra.mxu0 %v2341
        %2622 = vmatprep.subr.mxu0 0.0
        %2623 = vmatpush2.msra.mxu0 %v2372
        %2624 = vmatprep.subr.mxu0 0.0
        %2625 = vmatpush2.msra.mxu0 %v2371
        %2626 = vmatprep.subr.mxu0 0.0
        %2627 = vmatpush2.msra.mxu0 %v2370
        %2628 = vmatprep.subr.mxu0 0.0
        %2629 = vmatpush2.msra.mxu0 %v2369
        %2630 = vmatprep.subr.mxu0 0.0
        %2631 = vmatpush2.msra.mxu0 %v2368
        %2632 = vmatprep.subr.mxu0 0.0
        %2633 = vmatpush2.msra.mxu0 %v2367
        %2634 = vmatprep.subr.mxu0 0.0
        %2635 = vmatpush2.msra.mxu0 %v2366
        %2636 = vmatprep.subr.mxu0 0.0
        %2637 = vmatpush2.msra.mxu0 %v2365
        %2638 = vmatprep.subr.mxu0 0.0
        %2639 = vmatpush2.msra.mxu0 %v2364
        %2640 = vmatprep.subr.mxu0 0.0
        %2641 = vmatpush2.msra.mxu0 %v2363
        %2642 = vmatprep.subr.mxu0 0.0
        %2643 = vmatpush2.msra.mxu0 %v2362
        %2644 = vmatprep.subr.mxu0 0.0
        %2645 = vmatpush2.msra.mxu0 %v2361
        %2646 = vmatprep.subr.mxu0 0.0
        %2647 = vmatpush2.msra.mxu0 %v2360
        %2648 = vmatprep.subr.mxu0 0.0
        %2649 = vmatpush2.msra.mxu0 %v2359
        %2650 = vmatprep.subr.mxu0 0.0
        %2651 = vmatpush2.msra.mxu0 %v2358
        %2652 = vmatprep.subr.mxu0 0.0
        %2653 = vmatpush2.msra.mxu0 %v2357
        %2654 = vmatprep.mubr.f32.mxu0 %v2244
        %2655 = vmatmul.mubr.f32.gmra.mxu0 %v2243
        %v2656 = vpop.f32.mrf.mxu0
        %v2657 = vadd.f32 %v2587, %v2656
        %v2658 = vpop.f32.mrf.mxu0
        %2659 = vdwg.mxu0
        %2660 = vst [vmem:[%s379] sm:$0xff] %v2657
        %s2661 = sand.u32 %s269, 1
        %s2662 = scalar_lea.sflag [#allocation5], %s2661
        %s2663 = sand.u32 %s269, 1
        %s2664 = smul.addr %s2663, 8
        %s2665 = scalar_lea.vmem [#allocation4], %s2664
        // Predicated region
        $region65: #{wide_cnn_forward.1} parent=63 // pred_check
          %p2666 = pneg %p279
        $region66: #{wide_cnn_forward.1} parent=63 // pred_check_branch
          %2668 = sbr.rel (%p2666) target = $region68
        $region67: #{wide_cnn_forward.1} parent=63 // pred_region
          %s2670 = ssub.s32 128, 128
          %2671 = vsyncadd %s2662, %s2670
          %s2672 = smul.addr %s25, 128
          %s2673 = scalar_lea.hbm %s11, %s2672
          %s2675 = sshll.u32 %s2665, 4
          %s2676 = int_to_ptr.vmem [resolvable:$true] %s2675
          %2678 = dma.vmem_to_hbm [thread:$0]  %s2676, 128, %s2673, %s2662
        $region68: #{wide_cnn_forward.1} parent=63 // pred_fallthru
          _
      $region64: #{wide_cnn_forward.1} parent=5 // pred_fallthru
        _
      %p2679 = scmp.le.s32.totalorder 2, %s20
      // Predicated region
      $region69: #{wide_cnn_forward.1} parent=5 // pred_check
        %p2680 = pneg %p2679
      $region70: #{wide_cnn_forward.1} parent=5 // pred_check_branch
        %2682 = sbr.rel (%p2680) target = $region72
      $region71: #{wide_cnn_forward.1} parent=5 // pred_region
        %s2683 = ssub.s32 %s20, 2
        // Predicated region
        $region73: #{wide_cnn_forward.1} parent=71 // pred_check
          %p2684 = pneg %p285
        $region74: #{wide_cnn_forward.1} parent=71 // pred_check_branch
          %2686 = sbr.rel (%p2684) target = $region76
        $region75: #{wide_cnn_forward.1} parent=71 // pred_region
          %s2687 = sand.u32 %s270, 1
          %s2688 = scalar_lea.sflag [#allocation5], %s2687
          %s2689 = sand.u32 %s270, 1
          %s2690 = smul.addr %s2689, 8
          %s2691 = scalar_lea.vmem [#allocation4], %s2690
          %2692 = dma.done %s2688, 128
        $region76: #{wide_cnn_forward.1} parent=71 // pred_fallthru
          _
      $region72: #{wide_cnn_forward.1} parent=5 // pred_fallthru
        _
    $region6: #{wide_cnn_forward.1} parent=1 // loop_footer
      %s24 = sadd.s32 1, %s20
    $region7: #{wide_cnn_forward.1} parent=1 // loop_footer_branch
      %19 = sbr.rel target = $region3
    $region8: #{wide_cnn_forward.1} parent=1 // loop_exit
      _
    %2693 = vsyncpa [#allocation5], 1
    %s2694 = scalar_lea.sflag [#allocation5], 1
    %2695 = vsyncpa %s2694, 1

</llo_original>
